<compile_context>
chip_gen: v6e
topology: v6e:2x2x1
jax: 0.10.0
libtpu: 0.0.40
codegen_flags: <defaults>
</compile_context>

<pallas_src>
import functools

import numpy as np
import jax
import jax.numpy as jnp
from jax.experimental import pallas as pl
from jax.experimental.pallas import tpu as pltpu

L = 10
COORD_DIM = 2
IN_DIM = 2 * L * COORD_DIM  # 40
HIDDEN = 64
LATENT = 8
OUT_DIM = 3
OUT_ROWS = 2 * LATENT       # 16-row stacked output (latent 0-7, rgb 8-10, pad 11-15)


def _round_up(x, m):
    return ((x + m - 1) // m) * m


def siren_kernel(c_ref,
                 w1_ref, b1_ref, w2_ref, b2_ref,
                 w3_ref, b3_ref, w4_ref, b4_ref,
                 out_ref):
    c = c_ref[...]                      # (2, TN)  -- N on the lane axis

    # --- positional encoding via angle-addition recurrence -----------------
    # Only 2 sin + 2 cos EUP evaluations per column; harmonics 2..L are pure
    # VPU FMAs.  Rows are emitted in the PyTorch feature order:
    #   per i: [sin(i*c0), sin(i*c1), cos(i*c0), cos(i*c1)]
    s1 = jnp.sin(c)                     # (2, TN)
    k1 = jnp.cos(c)                     # (2, TN)
    pieces = []
    s, k = s1, k1
    for i in range(L):
        pieces.append(s)
        pieces.append(k)
        if i + 1 < L:
            # sin((i+1)c) = s*k1 + k*s1 ; cos((i+1)c) = k*k1 - s*s1
            s, k = s * k1 + k * s1, k * k1 - s * s1
    x = jnp.concatenate(pieces, axis=0)  # (40, TN), PyTorch feature order

    # --- encoder: Linear(40,64) -> HSine -> Linear(64,8) -> Sine -----------
    h = jnp.dot(w1_ref[...], x, preferred_element_type=jnp.float32) + b1_ref[...]
    # HSine: sin(sinh(2h)).  Single exp on |h| (e >= 1) + exact reciprocal:
    # robust (no underflow -> inf -> NaN) and accurate enough for the 30x
    # amplification in the next layer.
    e = jnp.exp(2.0 * jnp.abs(h))
    sh = 0.5 * (e - 1.0 / e)
    h = jnp.sin(jnp.where(h < 0.0, -sh, sh))

    # Sine(30x): the 30 scale is pre-folded into w2/b2 by the wrapper.
    lat = jnp.dot(w2_ref[...], h, preferred_element_type=jnp.float32) + b2_ref[...]
    lat = jnp.sin(lat)                   # (8, TN)

    # --- decoder: Linear(8,64) -> SiLU -> Linear(64,3 padded to 8) ---------
    d = jnp.dot(w3_ref[...], lat, preferred_element_type=jnp.float32) + b3_ref[...]
    d = d * (0.5 + 0.5 * jnp.tanh(0.5 * d))        # SiLU via one EUP tanh
    o = jnp.dot(w4_ref[...], d, preferred_element_type=jnp.float32) + b4_ref[...]

    # Two full 8-sublane-group stores (no masked vst).
    out_ref[0:LATENT, :] = lat.astype(out_ref.dtype)
    out_ref[LATENT:OUT_ROWS, :] = o.astype(out_ref.dtype)


@functools.partial(jax.jit, static_argnames=("tile_n",))
def siren_forward(coords, params, tile_n=8192):
    """coords: (N, 2) float32.  Returns (out (N,3), latent (N,8))."""
    N = coords.shape[0]
    dtype = coords.dtype
    w1, b1, w2, b2, w3, b3, w4, b4 = params

    # --- tile selection -----------------------------------------------------
    # n128 = minimal lane-padded batch; choose k tiles so padding waste stays
    # < 128*k lanes and the parallel grid has >= 2 steps whenever N allows
    # (feeds both TensorCores on v7x; negligible overhead on v5e/v6e).
    tile_n = _round_up(max(int(tile_n), 128), 128)
    n128 = _round_up(max(N, 1), 128)
    k_tiles = -(-n128 // tile_n)                    # ceil div
    if n128 >= 2 * 128:
        k_tiles = max(k_tiles, 2)
    tn = _round_up(-(-n128 // k_tiles), 128)
    n_pad = tn * k_tiles

    # --- wrapper-side layout plumbing ---------------------------------------
    # N on the lane axis; weights transposed once so the kernel computes
    # (out_f, in_f) @ (in_f, TN).  Sine scale folded into w2/b2; W4/b4 padded
    # to 8 output rows so the rgb store is a full sublane group.
    coords_t = jnp.pad(coords.T, ((0, 0), (0, n_pad - N)))
    w1t, b1t = w1.T, b1.reshape(HIDDEN, 1)
    w2t = (30.0 * w2.T).astype(dtype)
    b2t = (30.0 * b2.reshape(LATENT, 1)).astype(dtype)
    w3t, b3t = w3.T, b3.reshape(HIDDEN, 1)
    w4t = jnp.zeros((LATENT, HIDDEN), dtype).at[:OUT_DIM, :].set(w4.T)
    b4t = jnp.zeros((LATENT, 1), dtype).at[:OUT_DIM, :].set(b4.reshape(OUT_DIM, 1))

    def full_spec(a):
        # Tiny constant operands: whole array, same block every grid step.
        return pl.BlockSpec(a.shape, lambda i: (0, 0))

    grid = (n_pad // tn,)
    stacked = pl.pallas_call(
        siren_kernel,
        out_shape=jax.ShapeDtypeStruct((OUT_ROWS, n_pad), dtype),
        grid=grid,
        in_specs=[
            pl.BlockSpec((COORD_DIM, tn), lambda i: (0, i)),
            full_spec(w1t), full_spec(b1t),
            full_spec(w2t), full_spec(b2t),
            full_spec(w3t), full_spec(b3t),
            full_spec(w4t), full_spec(b4t),
        ],
        out_specs=pl.BlockSpec((OUT_ROWS, tn), lambda i: (0, i)),
        compiler_params=pltpu.CompilerParams(
            dimension_semantics=("parallel",),
            # Safe on all generations (equals v6e/v7x default scoped limit,
            # raises v5e's 16 MiB default so TN=8192 f32 slabs never spill).
            vmem_limit_bytes=32 * 1024 * 1024,
        ),
    )(coords_t, w1t, b1t, w2t, b2t, w3t, b3t, w4t, b4t)

    latent = stacked[0:LATENT, :N].T
    out = stacked[LATENT:LATENT + OUT_DIM, :N].T
    return out, latent


def init_params(key):
    """Deterministic synthetic weights (PyTorch-Linear-like uniform init).

    Weights are stored as (in_features, out_features) so the reference does
    x @ W; biases are (1, out_features).  The kernel wrapper transposes them."""
    def linear(key, fan_in, fan_out):
        kw, kb = jax.random.split(key)
        bound = 1.0 / jnp.sqrt(fan_in)
        w = jax.random.uniform(kw, (fan_in, fan_out), jnp.float32, -bound, bound)
        b = jax.random.uniform(kb, (1, fan_out), jnp.float32, -bound, bound)
        return w, b

    k1, k2, k3, k4 = jax.random.split(key, 4)
    w1, b1 = linear(k1, IN_DIM, HIDDEN)
    w2, b2 = linear(k2, HIDDEN, LATENT)
    w3, b3 = linear(k3, LATENT, HIDDEN)
    w4, b4 = linear(k4, HIDDEN, OUT_DIM)
    return (w1, b1, w2, b2, w3, b3, w4, b4)


def siren_reference(coords, params):
    """Pure-JAX reference matching the PyTorch module semantics."""
    w1, b1, w2, b2, w3, b3, w4, b4 = params
    parts = []
    for i in range(1, L + 1):
        parts.append(jnp.sin(coords * i))
        parts.append(jnp.cos(coords * i))
    x = jnp.concatenate(parts, axis=-1)
    h = jnp.sin(jnp.sinh(2.0 * (x @ w1 + b1)))
    lat = jnp.sin(30.0 * (h @ w2 + b2))
    d = jax.nn.silu(lat @ w3 + b3)
    out = d @ w4 + b4
    return out, lat


if __name__ == "__main__":
    key = jax.random.PRNGKey(0)
    kp, kc = jax.random.split(key)
    params = init_params(kp)

    N = 256  # small batch of 2D coordinates
    coords = jax.random.uniform(kc, (N, COORD_DIM), jnp.float32, -1.0, 1.0)

    out, latent = siren_forward(coords, params)
    out, latent = jax.block_until_ready((out, latent))

    ref_out, ref_lat = siren_reference(coords, params)
    assert out.shape == (N, OUT_DIM) and latent.shape == (N, LATENT)
    assert jnp.allclose(out, ref_out, atol=2e-3, rtol=2e-3)
    assert jnp.allclose(latent, ref_lat, atol=2e-3, rtol=2e-3)

    print("KERNEL_OK")
</pallas_src>

<mosaic_0001>
module attributes {stable_mosaic.version = 11 : i64} {
  func.func @siren_kernel(%arg0: i32, %arg1: memref<2x128xf32, #tpu.memory_space<vmem>>, %arg2: memref<64x40xf32, #tpu.memory_space<vmem>>, %arg3: memref<64x1xf32, #tpu.memory_space<vmem>>, %arg4: memref<8x64xf32, #tpu.memory_space<vmem>>, %arg5: memref<8x1xf32, #tpu.memory_space<vmem>>, %arg6: memref<64x8xf32, #tpu.memory_space<vmem>>, %arg7: memref<64x1xf32, #tpu.memory_space<vmem>>, %arg8: memref<8x64xf32, #tpu.memory_space<vmem>>, %arg9: memref<8x1xf32, #tpu.memory_space<vmem>>, %arg10: memref<16x128xf32, #tpu.memory_space<vmem>>) attributes {dimension_semantics = [#tpu.dimension_semantics<parallel>], iteration_bounds = array<i64: 2>, scalar_prefetch = 0 : i64, scratch_operands = 0 : i64, tpu.core_type = #tpu.core_type<tc>, window_params = [{transform_indices = @transform_0, window_bounds = array<i64: 2, 128>}, {pipeline_mode = #tpu.pipeline_mode<synchronous>, transform_indices = @transform_1, window_bounds = array<i64: 64, 40>}, {pipeline_mode = #tpu.pipeline_mode<synchronous>, transform_indices = @transform_2, window_bounds = array<i64: 64, 1>}, {pipeline_mode = #tpu.pipeline_mode<synchronous>, transform_indices = @transform_3, window_bounds = array<i64: 8, 64>}, {pipeline_mode = #tpu.pipeline_mode<synchronous>, transform_indices = @transform_4, window_bounds = array<i64: 8, 1>}, {pipeline_mode = #tpu.pipeline_mode<synchronous>, transform_indices = @transform_5, window_bounds = array<i64: 64, 8>}, {pipeline_mode = #tpu.pipeline_mode<synchronous>, transform_indices = @transform_6, window_bounds = array<i64: 64, 1>}, {pipeline_mode = #tpu.pipeline_mode<synchronous>, transform_indices = @transform_7, window_bounds = array<i64: 8, 64>}, {pipeline_mode = #tpu.pipeline_mode<synchronous>, transform_indices = @transform_8, window_bounds = array<i64: 8, 1>}, {transform_indices = @transform_9, window_bounds = array<i64: 16, 128>}]} {
    %c0 = arith.constant 0 : index
    %c0_0 = arith.constant 0 : index
    %0 = vector.load %arg1[%c0, %c0_0] : memref<2x128xf32, #tpu.memory_space<vmem>>, vector<2x128xf32>
    %1 = math.sin %0 : vector<2x128xf32>
    %2 = math.cos %0 : vector<2x128xf32>
    %3 = arith.mulf %1, %2 : vector<2x128xf32>
    %4 = arith.mulf %2, %1 : vector<2x128xf32>
    %5 = arith.addf %3, %4 : vector<2x128xf32>
    %6 = arith.mulf %2, %2 : vector<2x128xf32>
    %7 = arith.mulf %1, %1 : vector<2x128xf32>
    %8 = arith.subf %6, %7 : vector<2x128xf32>
    %9 = arith.mulf %5, %2 : vector<2x128xf32>
    %10 = arith.mulf %8, %1 : vector<2x128xf32>
    %11 = arith.addf %9, %10 : vector<2x128xf32>
    %12 = arith.mulf %8, %2 : vector<2x128xf32>
    %13 = arith.mulf %5, %1 : vector<2x128xf32>
    %14 = arith.subf %12, %13 : vector<2x128xf32>
    %15 = arith.mulf %11, %2 : vector<2x128xf32>
    %16 = arith.mulf %14, %1 : vector<2x128xf32>
    %17 = arith.addf %15, %16 : vector<2x128xf32>
    %18 = arith.mulf %14, %2 : vector<2x128xf32>
    %19 = arith.mulf %11, %1 : vector<2x128xf32>
    %20 = arith.subf %18, %19 : vector<2x128xf32>
    %21 = arith.mulf %17, %2 : vector<2x128xf32>
    %22 = arith.mulf %20, %1 : vector<2x128xf32>
    %23 = arith.addf %21, %22 : vector<2x128xf32>
    %24 = arith.mulf %20, %2 : vector<2x128xf32>
    %25 = arith.mulf %17, %1 : vector<2x128xf32>
    %26 = arith.subf %24, %25 : vector<2x128xf32>
    %27 = arith.mulf %23, %2 : vector<2x128xf32>
    %28 = arith.mulf %26, %1 : vector<2x128xf32>
    %29 = arith.addf %27, %28 : vector<2x128xf32>
    %30 = arith.mulf %26, %2 : vector<2x128xf32>
    %31 = arith.mulf %23, %1 : vector<2x128xf32>
    %32 = arith.subf %30, %31 : vector<2x128xf32>
    %33 = arith.mulf %29, %2 : vector<2x128xf32>
    %34 = arith.mulf %32, %1 : vector<2x128xf32>
    %35 = arith.addf %33, %34 : vector<2x128xf32>
    %36 = arith.mulf %32, %2 : vector<2x128xf32>
    %37 = arith.mulf %29, %1 : vector<2x128xf32>
    %38 = arith.subf %36, %37 : vector<2x128xf32>
    %39 = arith.mulf %35, %2 : vector<2x128xf32>
    %40 = arith.mulf %38, %1 : vector<2x128xf32>
    %41 = arith.addf %39, %40 : vector<2x128xf32>
    %42 = arith.mulf %38, %2 : vector<2x128xf32>
    %43 = arith.mulf %35, %1 : vector<2x128xf32>
    %44 = arith.subf %42, %43 : vector<2x128xf32>
    %45 = arith.mulf %41, %2 : vector<2x128xf32>
    %46 = arith.mulf %44, %1 : vector<2x128xf32>
    %47 = arith.addf %45, %46 : vector<2x128xf32>
    %48 = arith.mulf %44, %2 : vector<2x128xf32>
    %49 = arith.mulf %41, %1 : vector<2x128xf32>
    %50 = arith.subf %48, %49 : vector<2x128xf32>
    %51 = arith.mulf %47, %2 : vector<2x128xf32>
    %52 = arith.mulf %50, %1 : vector<2x128xf32>
    %53 = arith.addf %51, %52 : vector<2x128xf32>
    %54 = arith.mulf %50, %2 : vector<2x128xf32>
    %55 = arith.mulf %47, %1 : vector<2x128xf32>
    %56 = arith.subf %54, %55 : vector<2x128xf32>
    %57 = tpu.concatenate %1, %2, %5, %8, %11, %14, %17, %20, %23, %26, %29, %32, %35, %38, %41, %44 in 0 : vector<2x128xf32>, vector<2x128xf32>, vector<2x128xf32>, vector<2x128xf32>, vector<2x128xf32>, vector<2x128xf32>, vector<2x128xf32>, vector<2x128xf32>, vector<2x128xf32>, vector<2x128xf32>, vector<2x128xf32>, vector<2x128xf32>, vector<2x128xf32>, vector<2x128xf32>, vector<2x128xf32>, vector<2x128xf32> -> vector<32x128xf32>
    %58 = tpu.concatenate %47, %50, %53, %56 in 0 : vector<2x128xf32>, vector<2x128xf32>, vector<2x128xf32>, vector<2x128xf32> -> vector<8x128xf32>
    %59 = tpu.concatenate %57, %58 in 0 : vector<32x128xf32>, vector<8x128xf32> -> vector<40x128xf32>
    %c0_1 = arith.constant 0 : index
    %c0_2 = arith.constant 0 : index
    %60 = vector.load %arg2[%c0_1, %c0_2] : memref<64x40xf32, #tpu.memory_space<vmem>>, vector<64x40xf32>
    %cst = arith.constant dense<0.000000e+00> : vector<64x128xf32>
    %61 = tpu.matmul %60, %59, %cst {dimension_numbers = #tpu.dot_dimension_numbers<[1], [0], [0], [1], [0, 0, 1, 1], [], []>} : vector<64x40xf32>, vector<40x128xf32>, vector<64x128xf32> -> vector<64x128xf32>
    %c0_3 = arith.constant 0 : index
    %c0_4 = arith.constant 0 : index
    %62 = vector.load %arg3[%c0_3, %c0_4] : memref<64x1xf32, #tpu.memory_space<vmem>>, vector<64x1xf32>
    %63 = vector.broadcast %62 : vector<64x1xf32> to vector<64x128xf32>
    %64 = arith.addf %61, %63 : vector<64x128xf32>
    %65 = math.absf %64 : vector<64x128xf32>
    %cst_5 = arith.constant 2.000000e+00 : f32
    %66 = vector.broadcast %cst_5 : f32 to vector<64x128xf32>
    %67 = arith.mulf %66, %65 : vector<64x128xf32>
    %68 = math.exp %67 : vector<64x128xf32>
    %cst_6 = arith.constant 1.000000e+00 : f32
    %69 = vector.broadcast %cst_6 : f32 to vector<64x128xf32>
    %70 = arith.divf %69, %68 : vector<64x128xf32>
    %71 = arith.subf %68, %70 : vector<64x128xf32>
    %cst_7 = arith.constant 5.000000e-01 : f32
    %72 = vector.broadcast %cst_7 : f32 to vector<64x128xf32>
    %73 = arith.mulf %72, %71 : vector<64x128xf32>
    %cst_8 = arith.constant 0.000000e+00 : f32
    %74 = vector.broadcast %cst_8 : f32 to vector<64x128xf32>
    %75 = arith.cmpf olt, %64, %74 : vector<64x128xf32>
    %cst_9 = arith.constant 0.000000e+00 : f32
    %76 = vector.broadcast %cst_9 : f32 to vector<64x128xf32>
    %77 = arith.subf %76, %73 : vector<64x128xf32>
    %78 = arith.select %75, %77, %73 : vector<64x128xi1>, vector<64x128xf32>
    %79 = math.sin %78 : vector<64x128xf32>
    %c0_10 = arith.constant 0 : index
    %c0_11 = arith.constant 0 : index
    %80 = vector.load %arg4[%c0_10, %c0_11] : memref<8x64xf32, #tpu.memory_space<vmem>>, vector<8x64xf32>
    %cst_12 = arith.constant dense<0.000000e+00> : vector<8x128xf32>
    %81 = tpu.matmul %80, %79, %cst_12 {dimension_numbers = #tpu.dot_dimension_numbers<[1], [0], [0], [1], [0, 0, 1, 1], [], []>} : vector<8x64xf32>, vector<64x128xf32>, vector<8x128xf32> -> vector<8x128xf32>
    %c0_13 = arith.constant 0 : index
    %c0_14 = arith.constant 0 : index
    %82 = vector.load %arg5[%c0_13, %c0_14] : memref<8x1xf32, #tpu.memory_space<vmem>>, vector<8x1xf32>
    %83 = vector.broadcast %82 : vector<8x1xf32> to vector<8x128xf32>
    %84 = arith.addf %81, %83 : vector<8x128xf32>
    %85 = math.sin %84 : vector<8x128xf32>
    %c0_15 = arith.constant 0 : index
    %c0_16 = arith.constant 0 : index
    %86 = vector.load %arg6[%c0_15, %c0_16] : memref<64x8xf32, #tpu.memory_space<vmem>>, vector<64x8xf32>
    %cst_17 = arith.constant dense<0.000000e+00> : vector<64x128xf32>
    %87 = tpu.matmul %86, %85, %cst_17 {dimension_numbers = #tpu.dot_dimension_numbers<[1], [0], [0], [1], [0, 0, 1, 1], [], []>} : vector<64x8xf32>, vector<8x128xf32>, vector<64x128xf32> -> vector<64x128xf32>
    %c0_18 = arith.constant 0 : index
    %c0_19 = arith.constant 0 : index
    %88 = vector.load %arg7[%c0_18, %c0_19] : memref<64x1xf32, #tpu.memory_space<vmem>>, vector<64x1xf32>
    %89 = vector.broadcast %88 : vector<64x1xf32> to vector<64x128xf32>
    %90 = arith.addf %87, %89 : vector<64x128xf32>
    %cst_20 = arith.constant 5.000000e-01 : f32
    %91 = vector.broadcast %cst_20 : f32 to vector<64x128xf32>
    %92 = arith.mulf %91, %90 : vector<64x128xf32>
    %93 = math.tanh %92 : vector<64x128xf32>
    %cst_21 = arith.constant 5.000000e-01 : f32
    %94 = vector.broadcast %cst_21 : f32 to vector<64x128xf32>
    %95 = arith.mulf %94, %93 : vector<64x128xf32>
    %cst_22 = arith.constant 5.000000e-01 : f32
    %96 = vector.broadcast %cst_22 : f32 to vector<64x128xf32>
    %97 = arith.addf %96, %95 : vector<64x128xf32>
    %98 = arith.mulf %90, %97 : vector<64x128xf32>
    %c0_23 = arith.constant 0 : index
    %c0_24 = arith.constant 0 : index
    %99 = vector.load %arg8[%c0_23, %c0_24] : memref<8x64xf32, #tpu.memory_space<vmem>>, vector<8x64xf32>
    %cst_25 = arith.constant dense<0.000000e+00> : vector<8x128xf32>
    %100 = tpu.matmul %99, %98, %cst_25 {dimension_numbers = #tpu.dot_dimension_numbers<[1], [0], [0], [1], [0, 0, 1, 1], [], []>} : vector<8x64xf32>, vector<64x128xf32>, vector<8x128xf32> -> vector<8x128xf32>
    %c0_26 = arith.constant 0 : index
    %c0_27 = arith.constant 0 : index
    %101 = vector.load %arg9[%c0_26, %c0_27] : memref<8x1xf32, #tpu.memory_space<vmem>>, vector<8x1xf32>
    %102 = vector.broadcast %101 : vector<8x1xf32> to vector<8x128xf32>
    %103 = arith.addf %100, %102 : vector<8x128xf32>
    %c0_28 = arith.constant 0 : index
    %c0_29 = arith.constant 0 : index
    %104 = vector.load %arg10[%c0_28, %c0_29] : memref<16x128xf32, #tpu.memory_space<vmem>>, vector<8x128xf32>
    tpu.vector_store %arg10[%c0_28, %c0_29], %85 {strides = array<i32>} : memref<16x128xf32, #tpu.memory_space<vmem>>, vector<8x128xf32>,
    %c8 = arith.constant 8 : index
    %c0_30 = arith.constant 0 : index
    %105 = vector.load %arg10[%c8, %c0_30] : memref<16x128xf32, #tpu.memory_space<vmem>>, vector<8x128xf32>
    tpu.vector_store %arg10[%c8, %c0_30], %103 {strides = array<i32>} : memref<16x128xf32, #tpu.memory_space<vmem>>, vector<8x128xf32>,
    return
  }
  func.func @transform_0(%arg0: i32) -> (i32, i32) {
    %c0_i32 = arith.constant 0 : i32
    %c0_i32_0 = arith.constant 0 : i32
    return %c0_i32, %arg0 : i32, i32
  }
  func.func @transform_1(%arg0: i32) -> (i32, i32) {
    %c0_i32 = arith.constant 0 : i32
    %c0_i32_0 = arith.constant 0 : i32
    %c0_i32_1 = arith.constant 0 : i32
    return %c0_i32, %c0_i32_0 : i32, i32
  }
  func.func @transform_2(%arg0: i32) -> (i32, i32) {
    %c0_i32 = arith.constant 0 : i32
    %c0_i32_0 = arith.constant 0 : i32
    %c0_i32_1 = arith.constant 0 : i32
    return %c0_i32, %c0_i32_0 : i32, i32
  }
  func.func @transform_3(%arg0: i32) -> (i32, i32) {
    %c0_i32 = arith.constant 0 : i32
    %c0_i32_0 = arith.constant 0 : i32
    %c0_i32_1 = arith.constant 0 : i32
    return %c0_i32, %c0_i32_0 : i32, i32
  }
  func.func @transform_4(%arg0: i32) -> (i32, i32) {
    %c0_i32 = arith.constant 0 : i32
    %c0_i32_0 = arith.constant 0 : i32
    %c0_i32_1 = arith.constant 0 : i32
    return %c0_i32, %c0_i32_0 : i32, i32
  }
  func.func @transform_5(%arg0: i32) -> (i32, i32) {
    %c0_i32 = arith.constant 0 : i32
    %c0_i32_0 = arith.constant 0 : i32
    %c0_i32_1 = arith.constant 0 : i32
    return %c0_i32, %c0_i32_0 : i32, i32
  }
  func.func @transform_6(%arg0: i32) -> (i32, i32) {
    %c0_i32 = arith.constant 0 : i32
    %c0_i32_0 = arith.constant 0 : i32
    %c0_i32_1 = arith.constant 0 : i32
    return %c0_i32, %c0_i32_0 : i32, i32
  }
  func.func @transform_7(%arg0: i32) -> (i32, i32) {
    %c0_i32 = arith.constant 0 : i32
    %c0_i32_0 = arith.constant 0 : i32
    %c0_i32_1 = arith.constant 0 : i32
    return %c0_i32, %c0_i32_0 : i32, i32
  }
  func.func @transform_8(%arg0: i32) -> (i32, i32) {
    %c0_i32 = arith.constant 0 : i32
    %c0_i32_0 = arith.constant 0 : i32
    %c0_i32_1 = arith.constant 0 : i32
    return %c0_i32, %c0_i32_0 : i32, i32
  }
  func.func @transform_9(%arg0: i32) -> (i32, i32) {
    %c0_i32 = arith.constant 0 : i32
    %c0_i32_0 = arith.constant 0 : i32
    return %c0_i32, %arg0 : i32, i32
  }
}

</mosaic_0001>

<llo_original>
// kernel: siren_forward.1
$region0: #{siren_forward.1}
  #allocation0 [shape = 'u32[]', space=smem, size = 0x4, offset = 0x4, fixed_abs, tag = 'smem constant byte address 0x4 - core index']
  #allocation1 [shape = 'u32[144,128]{1,0:T(1,128)}', space=vmem, size = 0x12000, scoped, tag = 'internal scratch']
  %s0 = inlined_call_operand.vmem [shape: f32[2,256], index: 0, kind: input, shape index: {}]
  %s1 = inlined_call_operand.vmem [shape: f32[64,40], index: 1, kind: input, shape index: {}]
  %s2 = inlined_call_operand.vmem [shape: f32[64,1], index: 2, kind: input, shape index: {}]
  %s3 = inlined_call_operand.vmem [shape: f32[8,64], index: 3, kind: input, shape index: {}]
  %s4 = inlined_call_operand.vmem [shape: f32[8,1], index: 4, kind: input, shape index: {}]
  %s5 = inlined_call_operand.vmem [shape: f32[64,8], index: 5, kind: input, shape index: {}]
  %s6 = inlined_call_operand.vmem [shape: f32[64,1], index: 6, kind: input, shape index: {}]
  %s7 = inlined_call_operand.vmem [shape: f32[8,64], index: 7, kind: input, shape index: {}]
  %s8 = inlined_call_operand.vmem [shape: f32[8,1], index: 8, kind: input, shape index: {}]
  %s9 = inlined_call_operand.vmem [shape: f32[16,256], index: 9, kind: output, shape index: {}]
  %s10 = sld [smem:[#allocation0]]
  $region103: #{siren_forward.1} parent=0
    _
  %s12 = ssub.s32 1, %s10
  %s13 = scalar_select 0, %s12, %s10
  $region1: #{siren_forward.1} parent=0
    #allocation2 [shape = 'u8[16384]{0}', space=vmem, size = 0x4000, scoped, tag = 'output window, operand 0']
    loop: start=0, step=1, limit=4
    $region2: #{siren_forward.1} parent=1 // loop_pre_header
      _
    $region3: #{siren_forward.1} parent=1 // loop_header
      %s15 = sphi 0, %s19
      %p16 = scmp.ge.s32.totalorder %s15, 4
      %s25 = sphi 0, %s27
      %s28 = sphi 0, %s25
      %s29 = sphi 0, %s28
      %s45 = sphi 0, %s29
      %s49 = sphi 0, %s49
      %s51 = sphi 0, %s49
      %s52 = sphi 0, %s51
      %s66 = sphi 0, %s52
      %s70 = sphi 0, %s70
      %s72 = sphi 0, %s70
      %s73 = sphi 0, %s72
      %s87 = sphi 0, %s73
      %s91 = sphi 0, %s91
      %s93 = sphi 0, %s91
      %s94 = sphi 0, %s93
      %s108 = sphi 0, %s94
      %s112 = sphi 0, %s112
      %s114 = sphi 0, %s112
      %s115 = sphi 0, %s114
      %s129 = sphi 0, %s115
      %s133 = sphi 0, %s133
      %s135 = sphi 0, %s133
      %s136 = sphi 0, %s135
      %s150 = sphi 0, %s136
      %s154 = sphi 0, %s154
      %s156 = sphi 0, %s154
      %s157 = sphi 0, %s156
      %s171 = sphi 0, %s157
      %s175 = sphi 0, %s175
      %s177 = sphi 0, %s175
      %s178 = sphi 0, %s177
      %s192 = sphi 0, %s178
      %s196 = sphi 0, %s196
      %s198 = sphi 0, %s196
      %s199 = sphi 0, %s198
      %s213 = sphi 0, %s199
      %s219 = sphi 0, %s221
      %s222 = sphi 0, %s219
      %s223 = sphi 0, %s222
      %s239 = sphi 0, %s223
    $region4: #{siren_forward.1} parent=1 // loop_header_branch
      %18 = sbr.rel (%p16) target = $region8
    $region5: #{siren_forward.1} parent=1 // loop_body
      %s20 = ssub.s32 %s15, 1
      %s21 = ssub.s32 %s15, 2
      %s22 = sadd.s32 %s15, 1
      %s23 = ssub.s32 %s15, %s22
      %p24 = scmp.eq.s32.totalorder %s23, 0
      %s26 = sadd.s32 %s25, 1
      %s27 = scalar_select %p24, %s25, %s26
      %p30 = pneg %p24
      %p31 = scmp.eq.s32.totalorder %s15, 1
      %p32 = por %p30, %p31
      %p33 = scmp.ne.s32.totalorder %s25, %s28
      %p34 = scmp.eq.s32.totalorder %s15, 0
      %p35 = por %p33, %p34
      %p36 = scmp.ne.s32.totalorder %s25, %s28
      %p37 = scmp.eq.s32.totalorder %s20, 1
      %p38 = por %p36, %p37
      %p39 = scmp.ne.s32.totalorder %s28, %s29
      %p40 = scmp.eq.s32.totalorder %s20, 0
      %p41 = por %p39, %p40
      %p42 = scmp.ne.s32.totalorder %s28, %s29
      %p43 = scmp.eq.s32.totalorder %s21, 1
      %p44 = por %p42, %p43
      %p46 = scmp.ne.s32.totalorder %s29, %s45
      %p47 = scmp.eq.s32.totalorder %s21, 0
      %p48 = por %p46, %p47
      %s50 = sadd.s32 %s49, 1
      %p53 = scmp.eq.s32.totalorder %s15, 1
      %p54 = scmp.ne.s32.totalorder %s49, %s51
      %p55 = scmp.eq.s32.totalorder %s15, 0
      %p56 = por %p54, %p55
      %p57 = scmp.ne.s32.totalorder %s49, %s51
      %p58 = scmp.eq.s32.totalorder %s20, 1
      %p59 = por %p57, %p58
      %p60 = scmp.ne.s32.totalorder %s51, %s52
      %p61 = scmp.eq.s32.totalorder %s20, 0
      %p62 = por %p60, %p61
      %p63 = scmp.ne.s32.totalorder %s51, %s52
      %p64 = scmp.eq.s32.totalorder %s21, 1
      %p65 = por %p63, %p64
      %p67 = scmp.ne.s32.totalorder %s52, %s66
      %p68 = scmp.eq.s32.totalorder %s21, 0
      %p69 = por %p67, %p68
      %s71 = sadd.s32 %s70, 1
      %p74 = scmp.eq.s32.totalorder %s15, 1
      %p75 = scmp.ne.s32.totalorder %s70, %s72
      %p76 = scmp.eq.s32.totalorder %s15, 0
      %p77 = por %p75, %p76
      %p78 = scmp.ne.s32.totalorder %s70, %s72
      %p79 = scmp.eq.s32.totalorder %s20, 1
      %p80 = por %p78, %p79
      %p81 = scmp.ne.s32.totalorder %s72, %s73
      %p82 = scmp.eq.s32.totalorder %s20, 0
      %p83 = por %p81, %p82
      %p84 = scmp.ne.s32.totalorder %s72, %s73
      %p85 = scmp.eq.s32.totalorder %s21, 1
      %p86 = por %p84, %p85
      %p88 = scmp.ne.s32.totalorder %s73, %s87
      %p89 = scmp.eq.s32.totalorder %s21, 0
      %p90 = por %p88, %p89
      %s92 = sadd.s32 %s91, 1
      %p95 = scmp.eq.s32.totalorder %s15, 1
      %p96 = scmp.ne.s32.totalorder %s91, %s93
      %p97 = scmp.eq.s32.totalorder %s15, 0
      %p98 = por %p96, %p97
      %p99 = scmp.ne.s32.totalorder %s91, %s93
      %p100 = scmp.eq.s32.totalorder %s20, 1
      %p101 = por %p99, %p100
      %p102 = scmp.ne.s32.totalorder %s93, %s94
      %p103 = scmp.eq.s32.totalorder %s20, 0
      %p104 = por %p102, %p103
      %p105 = scmp.ne.s32.totalorder %s93, %s94
      %p106 = scmp.eq.s32.totalorder %s21, 1
      %p107 = por %p105, %p106
      %p109 = scmp.ne.s32.totalorder %s94, %s108
      %p110 = scmp.eq.s32.totalorder %s21, 0
      %p111 = por %p109, %p110
      %s113 = sadd.s32 %s112, 1
      %p116 = scmp.eq.s32.totalorder %s15, 1
      %p117 = scmp.ne.s32.totalorder %s112, %s114
      %p118 = scmp.eq.s32.totalorder %s15, 0
      %p119 = por %p117, %p118
      %p120 = scmp.ne.s32.totalorder %s112, %s114
      %p121 = scmp.eq.s32.totalorder %s20, 1
      %p122 = por %p120, %p121
      %p123 = scmp.ne.s32.totalorder %s114, %s115
      %p124 = scmp.eq.s32.totalorder %s20, 0
      %p125 = por %p123, %p124
      %p126 = scmp.ne.s32.totalorder %s114, %s115
      %p127 = scmp.eq.s32.totalorder %s21, 1
      %p128 = por %p126, %p127
      %p130 = scmp.ne.s32.totalorder %s115, %s129
      %p131 = scmp.eq.s32.totalorder %s21, 0
      %p132 = por %p130, %p131
      %s134 = sadd.s32 %s133, 1
      %p137 = scmp.eq.s32.totalorder %s15, 1
      %p138 = scmp.ne.s32.totalorder %s133, %s135
      %p139 = scmp.eq.s32.totalorder %s15, 0
      %p140 = por %p138, %p139
      %p141 = scmp.ne.s32.totalorder %s133, %s135
      %p142 = scmp.eq.s32.totalorder %s20, 1
      %p143 = por %p141, %p142
      %p144 = scmp.ne.s32.totalorder %s135, %s136
      %p145 = scmp.eq.s32.totalorder %s20, 0
      %p146 = por %p144, %p145
      %p147 = scmp.ne.s32.totalorder %s135, %s136
      %p148 = scmp.eq.s32.totalorder %s21, 1
      %p149 = por %p147, %p148
      %p151 = scmp.ne.s32.totalorder %s136, %s150
      %p152 = scmp.eq.s32.totalorder %s21, 0
      %p153 = por %p151, %p152
      %s155 = sadd.s32 %s154, 1
      %p158 = scmp.eq.s32.totalorder %s15, 1
      %p159 = scmp.ne.s32.totalorder %s154, %s156
      %p160 = scmp.eq.s32.totalorder %s15, 0
      %p161 = por %p159, %p160
      %p162 = scmp.ne.s32.totalorder %s154, %s156
      %p163 = scmp.eq.s32.totalorder %s20, 1
      %p164 = por %p162, %p163
      %p165 = scmp.ne.s32.totalorder %s156, %s157
      %p166 = scmp.eq.s32.totalorder %s20, 0
      %p167 = por %p165, %p166
      %p168 = scmp.ne.s32.totalorder %s156, %s157
      %p169 = scmp.eq.s32.totalorder %s21, 1
      %p170 = por %p168, %p169
      %p172 = scmp.ne.s32.totalorder %s157, %s171
      %p173 = scmp.eq.s32.totalorder %s21, 0
      %p174 = por %p172, %p173
      %s176 = sadd.s32 %s175, 1
      %p179 = scmp.eq.s32.totalorder %s15, 1
      %p180 = scmp.ne.s32.totalorder %s175, %s177
      %p181 = scmp.eq.s32.totalorder %s15, 0
      %p182 = por %p180, %p181
      %p183 = scmp.ne.s32.totalorder %s175, %s177
      %p184 = scmp.eq.s32.totalorder %s20, 1
      %p185 = por %p183, %p184
      %p186 = scmp.ne.s32.totalorder %s177, %s178
      %p187 = scmp.eq.s32.totalorder %s20, 0
      %p188 = por %p186, %p187
      %p189 = scmp.ne.s32.totalorder %s177, %s178
      %p190 = scmp.eq.s32.totalorder %s21, 1
      %p191 = por %p189, %p190
      %p193 = scmp.ne.s32.totalorder %s178, %s192
      %p194 = scmp.eq.s32.totalorder %s21, 0
      %p195 = por %p193, %p194
      %s197 = sadd.s32 %s196, 1
      %p200 = scmp.eq.s32.totalorder %s15, 1
      %p201 = scmp.ne.s32.totalorder %s196, %s198
      %p202 = scmp.eq.s32.totalorder %s15, 0
      %p203 = por %p201, %p202
      %p204 = scmp.ne.s32.totalorder %s196, %s198
      %p205 = scmp.eq.s32.totalorder %s20, 1
      %p206 = por %p204, %p205
      %p207 = scmp.ne.s32.totalorder %s198, %s199
      %p208 = scmp.eq.s32.totalorder %s20, 0
      %p209 = por %p207, %p208
      %p210 = scmp.ne.s32.totalorder %s198, %s199
      %p211 = scmp.eq.s32.totalorder %s21, 1
      %p212 = por %p210, %p211
      %p214 = scmp.ne.s32.totalorder %s199, %s213
      %p215 = scmp.eq.s32.totalorder %s21, 0
      %p216 = por %p214, %p215
      %s217 = ssub.s32 %s15, %s22
      %p218 = scmp.eq.s32.totalorder %s217, 0
      %s220 = sadd.s32 %s219, 1
      %s221 = scalar_select %p218, %s219, %s220
      %p224 = pneg %p218
      %p225 = scmp.eq.s32.totalorder %s15, 1
      %p226 = por %p224, %p225
      %p227 = scmp.ne.s32.totalorder %s219, %s222
      %p228 = scmp.eq.s32.totalorder %s15, 0
      %p229 = por %p227, %p228
      %p230 = scmp.ne.s32.totalorder %s219, %s222
      %p231 = scmp.eq.s32.totalorder %s20, 1
      %p232 = por %p230, %p231
      %p233 = scmp.ne.s32.totalorder %s222, %s223
      %p234 = scmp.eq.s32.totalorder %s20, 0
      %p235 = por %p233, %p234
      %p236 = scmp.ne.s32.totalorder %s222, %s223
      %p237 = scmp.eq.s32.totalorder %s21, 1
      %p238 = por %p236, %p237
      %p240 = scmp.ne.s32.totalorder %s223, %s239
      %p241 = scmp.eq.s32.totalorder %s21, 0
      %p242 = por %p240, %p241
      %p243 = scmp.le.s32.totalorder 1, %s15
      %p244 = scmp.lt.s32.totalorder %s15, 3
      %p245 = pnand %p243, %p244
      %p246 = pneg %p245
      // Predicated region
      $region9: #{siren_forward.1} parent=5 // pred_check
        _
      $region10: #{siren_forward.1} parent=5 // pred_check_branch
        %248 = sbr.rel (%p245) target = $region12
      $region11: #{siren_forward.1} parent=5 // pred_region
        %s249 = ssub.s32 %s15, 1
        // Predicated region
        $region13: #{siren_forward.1} parent=11 // pred_check
          %p250 = pneg %p62
        $region14: #{siren_forward.1} parent=11 // pred_check_branch
          %252 = sbr.rel (%p250) target = $region16
        $region15: #{siren_forward.1} parent=11 // pred_region
          _
        $region16: #{siren_forward.1} parent=11 // pred_fallthru
          _
        // Predicated region
        $region17: #{siren_forward.1} parent=11 // pred_check
          %p253 = pneg %p83
        $region18: #{siren_forward.1} parent=11 // pred_check_branch
          %255 = sbr.rel (%p253) target = $region20
        $region19: #{siren_forward.1} parent=11 // pred_region
          _
        $region20: #{siren_forward.1} parent=11 // pred_fallthru
          _
        // Predicated region
        $region21: #{siren_forward.1} parent=11 // pred_check
          %p256 = pneg %p104
        $region22: #{siren_forward.1} parent=11 // pred_check_branch
          %258 = sbr.rel (%p256) target = $region24
        $region23: #{siren_forward.1} parent=11 // pred_region
          _
        $region24: #{siren_forward.1} parent=11 // pred_fallthru
          _
        // Predicated region
        $region25: #{siren_forward.1} parent=11 // pred_check
          %p259 = pneg %p125
        $region26: #{siren_forward.1} parent=11 // pred_check_branch
          %261 = sbr.rel (%p259) target = $region28
        $region27: #{siren_forward.1} parent=11 // pred_region
          _
        $region28: #{siren_forward.1} parent=11 // pred_fallthru
          _
        // Predicated region
        $region29: #{siren_forward.1} parent=11 // pred_check
          %p262 = pneg %p146
        $region30: #{siren_forward.1} parent=11 // pred_check_branch
          %264 = sbr.rel (%p262) target = $region32
        $region31: #{siren_forward.1} parent=11 // pred_region
          _
        $region32: #{siren_forward.1} parent=11 // pred_fallthru
          _
        // Predicated region
        $region33: #{siren_forward.1} parent=11 // pred_check
          %p265 = pneg %p167
        $region34: #{siren_forward.1} parent=11 // pred_check_branch
          %267 = sbr.rel (%p265) target = $region36
        $region35: #{siren_forward.1} parent=11 // pred_region
          _
        $region36: #{siren_forward.1} parent=11 // pred_fallthru
          _
        // Predicated region
        $region37: #{siren_forward.1} parent=11 // pred_check
          %p268 = pneg %p188
        $region38: #{siren_forward.1} parent=11 // pred_check_branch
          %270 = sbr.rel (%p268) target = $region40
        $region39: #{siren_forward.1} parent=11 // pred_region
          _
        $region40: #{siren_forward.1} parent=11 // pred_fallthru
          _
        // Predicated region
        $region41: #{siren_forward.1} parent=11 // pred_check
          %p271 = pneg %p209
        $region42: #{siren_forward.1} parent=11 // pred_check_branch
          %273 = sbr.rel (%p271) target = $region44
        $region43: #{siren_forward.1} parent=11 // pred_region
          _
        $region44: #{siren_forward.1} parent=11 // pred_fallthru
          _
      $region12: #{siren_forward.1} parent=5 // pred_fallthru
        _
      %p274 = scmp.lt.s32.totalorder %s15, 2
      // Predicated region
      $region45: #{siren_forward.1} parent=5 // pred_check
        %p275 = pneg %p274
      $region46: #{siren_forward.1} parent=5 // pred_check_branch
        %277 = sbr.rel (%p275) target = $region48
      $region47: #{siren_forward.1} parent=5 // pred_region
        // Predicated region
        $region49: #{siren_forward.1} parent=47 // pred_check
          %p278 = pneg %p35
        $region50: #{siren_forward.1} parent=47 // pred_check_branch
          %280 = sbr.rel (%p278) target = $region52
        $region51: #{siren_forward.1} parent=47 // pred_region
          %p281 = scmp.lt.s32.totalorder %s15, 1
          %s282 = scalar_select %p281, %s15, 1
          %s283 = smul.addr %s282, 2
          %s284 = scalar_lea.vmem %s0, %s283
        $region52: #{siren_forward.1} parent=47 // pred_fallthru
          _
      $region48: #{siren_forward.1} parent=5 // pred_fallthru
        _
      %p285 = scmp.le.s32.totalorder 1, %s15
      %p286 = scmp.lt.s32.totalorder %s15, 3
      %p287 = pnand %p285, %p286
      %p288 = pneg %p287
      // Predicated region
      $region53: #{siren_forward.1} parent=5 // pred_check
        _
      $region54: #{siren_forward.1} parent=5 // pred_check_branch
        %290 = sbr.rel (%p287) target = $region56
      $region55: #{siren_forward.1} parent=5 // pred_region
        %s291 = ssub.s32 %s15, 1
        %p292 = scmp.lt.s32.totalorder %s20, 1
        %s293 = scalar_select %p292, %s20, 1
        %s294 = smul.addr %s293, 2
        %s295 = scalar_lea.vmem %s0, %s294
        %p296 = pneg %p41
        %p297 = pneg %p38
        %p298 = pneg %p62
        %p299 = pneg %p59
        %p300 = pneg %p83
        %p301 = pneg %p80
        %p302 = pneg %p104
        %p303 = pneg %p101
        %p304 = pneg %p125
        %p305 = pneg %p122
        %p306 = pneg %p146
        %p307 = pneg %p143
        %p308 = pneg %p167
        %p309 = pneg %p164
        %p310 = pneg %p188
        %p311 = pneg %p185
        %p312 = pneg %p209
        %p313 = pneg %p206
        %p314 = pneg %p235
        %p315 = pneg %p232
        %s316 = sand.u32 %s222, 1
        %s317 = sand.u32 %s222, 1
        %s318 = smul.addr %s317, 16
        %s319 = scalar_lea.vmem [#allocation2], %s318
        %p320 = scmp.lt.s32.totalorder %s20, 1
        %s321 = scalar_select %p320, %s20, 1
        %s322 = smul.addr %s321, 2
        %s323 = scalar_lea.vmem %s0, %s322
        %v324 = vld [vmem:[%s323] sm:$0x3]
        %v325 = vand.u32 2147483647, %v324
        %vm326 = vcmp.le.f32.partialorder %v325, 0.7853982
        %vm327 = vcmp.lt.s32.totalorder %v324, 0
        %v328 = vand.u32 %v324, 2139095040
        %v329 = vshrl.u32 %v328, 23
        %v330 = vsub.s32 %v329, 127
        %v331 = vand.u32 2147483647, %v324
        %v332 = vand.u32 %v331, 8388607
        %v333 = vor.u32 %v332, 8388608
        %v334 = vsub.s32 0, %v333
        %v335 = vadd.s32 %v330, 1
        %vm336 = vcmp.gt.s32.totalorder %v335, 0
        %v337 = vsel %vm336, %v335, 0
        %v338 = vshrl.u32 %v337, 5
        %v339 = vand.u32 %v337, 31
        %v340 = vsub.s32 32, %v339
        %v341 = vshrl.u32 683565275, %v340
        %v342 = vshll.u32 683565275, %v339
        %v343 = vshrl.u32 2475754826, %v340
        %v344 = vor.u32 %v342, %v343
        %v345 = vshll.u32 2475754826, %v339
        %v346 = vshrl.u32 2131351028, %v340
        %v347 = vor.u32 %v345, %v346
        %v348 = vshll.u32 2131351028, %v339
        %v349 = vshrl.u32 2102212464, %v340
        %v350 = vor.u32 %v348, %v349
        %v351 = vshll.u32 2102212464, %v339
        %v352 = vshrl.u32 920167782, %v340
        %v353 = vor.u32 %v351, %v352
        %v354 = vshll.u32 920167782, %v339
        %v355 = vshrl.u32 1326507024, %v340
        %v356 = vor.u32 %v354, %v355
        %vm357 = vcmp.lt.s32.totalorder %v338, 1
        %vm358 = vcmp.lt.s32.totalorder %v338, 2
        %vm359 = vcmp.lt.s32.totalorder %v338, 3
        %vm360 = vcmp.lt.s32.totalorder %v338, 4
        %v361 = vsel %vm357, %v341, %v344
        %v362 = vsel %vm360, %v350, 2102212464
        %v363 = vsel %vm359, %v347, %v362
        %v364 = vsel %vm358, %v361, %v363
        %v365 = vsel %vm357, %v344, %v347
        %v366 = vsel %vm360, %v353, 920167782
        %v367 = vsel %vm359, %v350, %v366
        %v368 = vsel %vm358, %v365, %v367
        %v369 = vsel %vm357, %v347, %v350
        %v370 = vsel %vm360, %v356, 1326507024
        %v371 = vsel %vm359, %v353, %v370
        %v372 = vsel %vm358, %v369, %v371
        %v373 = vshll.u32 %v333, 8
        %v374 = vmul.u32.u64.compose %v373, %v372
        %v375 = vextract.low.u32 %v374
        %v376 = vextract.high.u32 %v374
        %v377 = vmul.u32.u64.compose %v373, %v368
        %v378 = vextract.low.u32 %v377
        %v379 = vextract.high.u32 %v377
        %v380 = vmul.u32 %v373, %v364
        %v381 = vadd.s32 %v376, %v378
        %vm382 = vc.u32 %v376, %v378
        %v383 = vadd.s32 %v379, 1
        %v384 = vsel %vm382, %v383, %v379
        %v385 = vadd.s32 %v380, %v384
        %v386 = vadd.s32 %v385, 536870912
        %v387 = vshrl.u32 %v386, 30
        %v388 = vshll.u32 %v387, 30
        %v389 = vsub.s32 %v385, %v388
        %vm390 = vcmp.lt.s32.totalorder %v389, 0
        %v391 = vsub.s32 0, %v389
        %v392 = vsel %vm390, %v391, %v389
        %v393 = vclz %v392
        %v394 = vsub.s32 %v393, 2
        %vm395 = vcmp.gt.s32.totalorder 0, %v394
        %v396 = vsel %vm395, 0, %v394
        %v397 = vsub.s32 32, %v396
        %v398 = vshll.u32 %v389, %v396
        %v399 = vshrl.u32 %v381, %v397
        %v400 = vor.u32 %v398, %v399
        %v401 = vsub.s32 4294967266, %v396
        %v402 = vadd.s32 %v401, 127
        %v403 = vshll.u32 %v402, 23
        %v404 = vor.u32 4788187, %v403
        %v405 = vand.u32 2147483647, %v404
        %v407 = vcvt.s32.f32 %v400
        %v408 = vmul.f32 %v407, %v405
        %v409 = vxor.u32 %v408, 2147483648
        %v410 = vsel %vm327, %v409, %v408
        %v411 = vsub.s32 4, %v387
        %v412 = vsel %vm327, %v411, %v387
        %v413 = vsel %vm326, %v324, %v410
        %v414 = vsel %vm326, 0, %v412
        %v415 = vcosq.f32.pop %v413
        %v416 = vsinq.f32.pop %v413
        %vm417 = vweird.f32 %v324
        %v418 = vadd.s32 %v414, 3
        %v419 = vand.u32 %v418, 3
        %vm420 = vcmp.lt.s32.totalorder %v419, 2
        %vm421 = vcmp.eq.s32.totalorder %v419, 0
        %v422 = vxor.u32 %v416, 2147483648
        %v423 = vsel %vm421, %v415, %v422
        %vm424 = vcmp.eq.s32.totalorder %v419, 2
        %v425 = vxor.u32 %v415, 2147483648
        %v426 = vsel %vm424, %v425, %v416
        %v427 = vsel %vm420, %v423, %v426
        %v428 = vsel %vm417, nan, %v427
        %v429 = vand.u32 2147483647, %v324
        %vm430 = vcmp.le.f32.partialorder %v429, 0.7853982
        %vm431 = vcmp.lt.s32.totalorder %v324, 0
        %v432 = vand.u32 %v324, 2139095040
        %v433 = vshrl.u32 %v432, 23
        %v434 = vsub.s32 %v433, 127
        %v435 = vand.u32 2147483647, %v324
        %v436 = vand.u32 %v435, 8388607
        %v437 = vor.u32 %v436, 8388608
        %v438 = vsub.s32 0, %v437
        %v439 = vadd.s32 %v434, 1
        %vm440 = vcmp.gt.s32.totalorder %v439, 0
        %v441 = vsel %vm440, %v439, 0
        %v442 = vshrl.u32 %v441, 5
        %v443 = vand.u32 %v441, 31
        %v444 = vsub.s32 32, %v443
        %v445 = vshrl.u32 683565275, %v444
        %v446 = vshll.u32 683565275, %v443
        %v447 = vshrl.u32 2475754826, %v444
        %v448 = vor.u32 %v446, %v447
        %v449 = vshll.u32 2475754826, %v443
        %v450 = vshrl.u32 2131351028, %v444
        %v451 = vor.u32 %v449, %v450
        %v452 = vshll.u32 2131351028, %v443
        %v453 = vshrl.u32 2102212464, %v444
        %v454 = vor.u32 %v452, %v453
        %v455 = vshll.u32 2102212464, %v443
        %v456 = vshrl.u32 920167782, %v444
        %v457 = vor.u32 %v455, %v456
        %v458 = vshll.u32 920167782, %v443
        %v459 = vshrl.u32 1326507024, %v444
        %v460 = vor.u32 %v458, %v459
        %vm461 = vcmp.lt.s32.totalorder %v442, 1
        %vm462 = vcmp.lt.s32.totalorder %v442, 2
        %vm463 = vcmp.lt.s32.totalorder %v442, 3
        %vm464 = vcmp.lt.s32.totalorder %v442, 4
        %v465 = vsel %vm461, %v445, %v448
        %v466 = vsel %vm464, %v454, 2102212464
        %v467 = vsel %vm463, %v451, %v466
        %v468 = vsel %vm462, %v465, %v467
        %v469 = vsel %vm461, %v448, %v451
        %v470 = vsel %vm464, %v457, 920167782
        %v471 = vsel %vm463, %v454, %v470
        %v472 = vsel %vm462, %v469, %v471
        %v473 = vsel %vm461, %v451, %v454
        %v474 = vsel %vm464, %v460, 1326507024
        %v475 = vsel %vm463, %v457, %v474
        %v476 = vsel %vm462, %v473, %v475
        %v477 = vshll.u32 %v437, 8
        %v478 = vmul.u32.u64.compose %v477, %v476
        %v479 = vextract.low.u32 %v478
        %v480 = vextract.high.u32 %v478
        %v481 = vmul.u32.u64.compose %v477, %v472
        %v482 = vextract.low.u32 %v481
        %v483 = vextract.high.u32 %v481
        %v484 = vmul.u32 %v477, %v468
        %v485 = vadd.s32 %v480, %v482
        %vm486 = vc.u32 %v480, %v482
        %v487 = vadd.s32 %v483, 1
        %v488 = vsel %vm486, %v487, %v483
        %v489 = vadd.s32 %v484, %v488
        %v490 = vadd.s32 %v489, 536870912
        %v491 = vshrl.u32 %v490, 30
        %v492 = vshll.u32 %v491, 30
        %v493 = vsub.s32 %v489, %v492
        %vm494 = vcmp.lt.s32.totalorder %v493, 0
        %v495 = vsub.s32 0, %v493
        %v496 = vsel %vm494, %v495, %v493
        %v497 = vclz %v496
        %v498 = vsub.s32 %v497, 2
        %vm499 = vcmp.gt.s32.totalorder 0, %v498
        %v500 = vsel %vm499, 0, %v498
        %v501 = vsub.s32 32, %v500
        %v502 = vshll.u32 %v493, %v500
        %v503 = vshrl.u32 %v485, %v501
        %v504 = vor.u32 %v502, %v503
        %v505 = vsub.s32 4294967266, %v500
        %v506 = vadd.s32 %v505, 127
        %v507 = vshll.u32 %v506, 23
        %v508 = vor.u32 4788187, %v507
        %v509 = vand.u32 2147483647, %v508
        %v511 = vcvt.s32.f32 %v504
        %v512 = vmul.f32 %v511, %v509
        %v513 = vxor.u32 %v512, 2147483648
        %v514 = vsel %vm431, %v513, %v512
        %v515 = vsub.s32 4, %v491
        %v516 = vsel %vm431, %v515, %v491
        %v517 = vsel %vm430, %v324, %v514
        %v518 = vsel %vm430, 0, %v516
        %v519 = vcosq.f32.pop %v517
        %v520 = vsinq.f32.pop %v517
        %vm521 = vweird.f32 %v324
        %v522 = vand.u32 %v518, 3
        %vm523 = vcmp.lt.s32.totalorder %v522, 2
        %vm524 = vcmp.eq.s32.totalorder %v522, 0
        %v525 = vxor.u32 %v520, 2147483648
        %v526 = vsel %vm524, %v519, %v525
        %vm527 = vcmp.eq.s32.totalorder %v522, 2
        %v528 = vxor.u32 %v519, 2147483648
        %v529 = vsel %vm527, %v528, %v520
        %v530 = vsel %vm523, %v526, %v529
        %v531 = vsel %vm521, nan, %v530
        %v532 = vmul.f32 %v428, %v531
        %v533 = vadd.f32 %v532, %v532
        %v534 = vmul.f32 %v531, %v531
        %v535 = vmul.f32 %v428, %v428
        %v536 = vsub.f32 %v534, %v535
        %v537 = vmul.f32 %v533, %v531
        %v538 = vmul.f32 %v536, %v428
        %v539 = vadd.f32 %v537, %v538
        %v540 = vmul.f32 %v536, %v531
        %v541 = vmul.f32 %v533, %v428
        %v542 = vsub.f32 %v540, %v541
        %v543 = vmul.f32 %v539, %v531
        %v544 = vmul.f32 %v542, %v428
        %v545 = vadd.f32 %v543, %v544
        %v546 = vmul.f32 %v542, %v531
        %v547 = vmul.f32 %v539, %v428
        %v548 = vsub.f32 %v546, %v547
        %v549 = vmul.f32 %v545, %v531
        %v550 = vmul.f32 %v548, %v428
        %v551 = vadd.f32 %v549, %v550
        %v552 = vmul.f32 %v548, %v531
        %v553 = vmul.f32 %v545, %v428
        %v554 = vsub.f32 %v552, %v553
        %v555 = vmul.f32 %v551, %v531
        %v556 = vmul.f32 %v554, %v428
        %v557 = vadd.f32 %v555, %v556
        %v558 = vmul.f32 %v554, %v531
        %v559 = vmul.f32 %v551, %v428
        %v560 = vsub.f32 %v558, %v559
        %v561 = vmul.f32 %v557, %v531
        %v562 = vmul.f32 %v560, %v428
        %v563 = vadd.f32 %v561, %v562
        %v564 = vmul.f32 %v560, %v531
        %v565 = vmul.f32 %v557, %v428
        %v566 = vsub.f32 %v564, %v565
        %v567 = vmul.f32 %v563, %v531
        %v568 = vmul.f32 %v566, %v428
        %v569 = vadd.f32 %v567, %v568
        %v570 = vmul.f32 %v566, %v531
        %v571 = vmul.f32 %v563, %v428
        %v572 = vsub.f32 %v570, %v571
        %v573 = vmul.f32 %v569, %v531
        %v574 = vmul.f32 %v572, %v428
        %v575 = vadd.f32 %v573, %v574
        %v576 = vmul.f32 %v572, %v531
        %v577 = vmul.f32 %v569, %v428
        %v578 = vsub.f32 %v576, %v577
        %v579 = vmul.f32 %v575, %v531
        %v580 = vmul.f32 %v578, %v428
        %v581 = vadd.f32 %v579, %v580
        %v582 = vmul.f32 %v578, %v531
        %v583 = vmul.f32 %v575, %v428
        %v584 = vsub.f32 %v582, %v583
        %v586 = vrot.slane %v531, 6
        %v589 = vrot.slane %v533, 4
        %v592 = vrot.slane %v536, 2
        %v595 = vrot.slane %v542, 6
        %v598 = vrot.slane %v545, 4
        %v601 = vrot.slane %v548, 2
        %v604 = vrot.slane %v554, 6
        %v607 = vrot.slane %v557, 4
        %v610 = vrot.slane %v560, 2
        %v613 = vrot.slane %v566, 6
        %v616 = vrot.slane %v569, 4
        %v619 = vrot.slane %v572, 2
        %vm621 = vcmask 1041408
        %v622 = vsel %vm621, %v428, %v586
        %vm623 = vcmask 1043456
        %v624 = vsel %vm623, %v622, %v589
        %vm625 = vcmask 1045504
        %v626 = vsel %vm625, %v624, %v592
        %v627 = vsel %vm621, %v539, %v595
        %v628 = vsel %vm623, %v627, %v598
        %v629 = vsel %vm625, %v628, %v601
        %v630 = vsel %vm621, %v551, %v604
        %v631 = vsel %vm623, %v630, %v607
        %v632 = vsel %vm625, %v631, %v610
        %v633 = vsel %vm621, %v563, %v613
        %v634 = vsel %vm623, %v633, %v616
        %v635 = vsel %vm625, %v634, %v619
        %v637 = vrot.slane %v578, 6
        %v640 = vrot.slane %v581, 4
        %v643 = vrot.slane %v584, 2
        %v645 = vsel %vm621, %v575, %v637
        %v646 = vsel %vm623, %v645, %v640
        %v647 = vsel %vm625, %v646, %v643
        %v648 = vld [vmem:[%s1] sm:$0xff]
        %v649 = vld [vmem:[%s1 + $0x8] sm:$0xff]
        %v650 = vld [vmem:[%s1 + $0x10] sm:$0xff]
        %v651 = vld [vmem:[%s1 + $0x18] sm:$0xff]
        %v652 = vld [vmem:[%s1 + $0x20] sm:$0xff]
        %v653 = vld [vmem:[%s1 + $0x28] sm:$0xff]
        %v654 = vld [vmem:[%s1 + $0x30] sm:$0xff]
        %v655 = vld [vmem:[%s1 + $0x38] sm:$0xff]
        %v656 = vld [vmem:[%s2] sm:$0xff]
        %v657 = vld [vmem:[%s2 + $0x8] sm:$0xff]
        %v658 = vld [vmem:[%s2 + $0x10] sm:$0xff]
        %v659 = vld [vmem:[%s2 + $0x18] sm:$0xff]
        %v660 = vld [vmem:[%s2 + $0x20] sm:$0xff]
        %v661 = vld [vmem:[%s2 + $0x28] sm:$0xff]
        %v662 = vld [vmem:[%s2 + $0x30] sm:$0xff]
        %v663 = vld [vmem:[%s2 + $0x38] sm:$0xff]
        %665 = vset.pattern.permute.xlu0 0
        %666 = vperm.xlu0 %665, %v656
        %v667 = vpop.permute.xlu0 %666
        %670 = vset.pattern.permute.xlu0 0
        %671 = vperm.xlu0 %670, %v657
        %v672 = vpop.permute.xlu0 %671
        %675 = vset.pattern.permute.xlu0 0
        %676 = vperm.xlu0 %675, %v658
        %v677 = vpop.permute.xlu0 %676
        %680 = vset.pattern.permute.xlu0 0
        %681 = vperm.xlu0 %680, %v659
        %v682 = vpop.permute.xlu0 %681
        %685 = vset.pattern.permute.xlu0 0
        %686 = vperm.xlu0 %685, %v660
        %v687 = vpop.permute.xlu0 %686
        %690 = vset.pattern.permute.xlu0 0
        %691 = vperm.xlu0 %690, %v661
        %v692 = vpop.permute.xlu0 %691
        %695 = vset.pattern.permute.xlu0 0
        %696 = vperm.xlu0 %695, %v662
        %v697 = vpop.permute.xlu0 %696
        %700 = vset.pattern.permute.xlu0 0
        %701 = vperm.xlu0 %700, %v663
        %v702 = vpop.permute.xlu0 %701
        %vm704 = vcmask 326656
        %v706 = vsel %vm704, %v648, 0
        %v709 = vsel %vm704, %v649, 0
        %v712 = vsel %vm704, %v650, 0
        %v715 = vsel %vm704, %v651, 0
        %v718 = vsel %vm704, %v652, 0
        %v721 = vsel %vm704, %v653, 0
        %v724 = vsel %vm704, %v654, 0
        %v727 = vsel %vm704, %v655, 0
        %729 = vmatprep.subr.mxu0 0.0
        %730 = vmatpush1.msra.mxu0 0.0
        %731 = vmatprep.subr.mxu0 0.0
        %732 = vmatpush1.msra.mxu0 0.0
        %733 = vmatprep.subr.mxu0 0.0
        %734 = vmatpush1.msra.mxu0 0.0
        %735 = vmatprep.subr.mxu0 0.0
        %736 = vmatpush1.msra.mxu0 0.0
        %737 = vmatprep.subr.mxu0 0.0
        %738 = vmatpush1.msra.mxu0 0.0
        %739 = vmatprep.subr.mxu0 0.0
        %740 = vmatpush1.msra.mxu0 0.0
        %741 = vmatprep.subr.mxu0 0.0
        %742 = vmatpush1.msra.mxu0 0.0
        %743 = vmatprep.subr.mxu0 0.0
        %744 = vmatpush1.msra.mxu0 0.0
        %745 = vmatprep.subr.mxu0 0.0
        %746 = vmatpush1.msra.mxu0 0.0
        %747 = vmatprep.subr.mxu0 0.0
        %748 = vmatpush1.msra.mxu0 0.0
        %749 = vmatprep.subr.mxu0 0.0
        %750 = vmatpush1.msra.mxu0 0.0
        %751 = vmatprep.subr.mxu0 0.0
        %752 = vmatpush1.msra.mxu0 %v647
        %753 = vmatprep.subr.mxu0 0.0
        %754 = vmatpush1.msra.mxu0 %v635
        %755 = vmatprep.subr.mxu0 0.0
        %756 = vmatpush1.msra.mxu0 %v632
        %757 = vmatprep.subr.mxu0 0.0
        %758 = vmatpush1.msra.mxu0 %v629
        %759 = vmatprep.subr.mxu0 0.0
        %760 = vmatpush1.msra.mxu0 %v626
        %761 = vmatprep.subr.mxu0 0.0
        %762 = vmatpush2.msra.mxu0 0.0
        %763 = vmatprep.subr.mxu0 0.0
        %764 = vmatpush2.msra.mxu0 0.0
        %765 = vmatprep.subr.mxu0 0.0
        %766 = vmatpush2.msra.mxu0 0.0
        %767 = vmatprep.subr.mxu0 0.0
        %768 = vmatpush2.msra.mxu0 0.0
        %769 = vmatprep.subr.mxu0 0.0
        %770 = vmatpush2.msra.mxu0 0.0
        %771 = vmatprep.subr.mxu0 0.0
        %772 = vmatpush2.msra.mxu0 0.0
        %773 = vmatprep.subr.mxu0 0.0
        %774 = vmatpush2.msra.mxu0 0.0
        %775 = vmatprep.subr.mxu0 0.0
        %776 = vmatpush2.msra.mxu0 0.0
        %777 = vmatprep.subr.mxu0 0.0
        %778 = vmatpush2.msra.mxu0 0.0
        %779 = vmatprep.subr.mxu0 0.0
        %780 = vmatpush2.msra.mxu0 0.0
        %781 = vmatprep.subr.mxu0 0.0
        %782 = vmatpush2.msra.mxu0 0.0
        %783 = vmatprep.subr.mxu0 0.0
        %784 = vmatpush2.msra.mxu0 0.0
        %785 = vmatprep.subr.mxu0 0.0
        %786 = vmatpush2.msra.mxu0 0.0
        %787 = vmatprep.subr.mxu0 0.0
        %788 = vmatpush2.msra.mxu0 0.0
        %789 = vmatprep.subr.mxu0 0.0
        %790 = vmatpush2.msra.mxu0 0.0
        %791 = vmatprep.subr.mxu0 0.0
        %792 = vmatpush2.msra.mxu0 0.0
        %793 = vmatprep.mubr.f32.mxu0 0.0
        %794 = vmatmul.mubr.f32.gmra.mxu0 %v706
        %v795 = vpop.f32.mrf.mxu0
        %v796 = vadd.f32 %v667, %v795
        %v797 = vpop.f32.mrf.mxu0
        %798 = vmatprep.mubr.f32.mxu0 0.0
        %799 = vmatmul.mubr.f32.gmra.mxu0 %v709
        %v800 = vpop.f32.mrf.mxu0
        %v801 = vadd.f32 %v672, %v800
        %v802 = vpop.f32.mrf.mxu0
        %803 = vmatprep.mubr.f32.mxu0 0.0
        %804 = vmatmul.mubr.f32.gmra.mxu0 %v712
        %v805 = vpop.f32.mrf.mxu0
        %v806 = vadd.f32 %v677, %v805
        %v807 = vpop.f32.mrf.mxu0
        %808 = vmatprep.mubr.f32.mxu0 0.0
        %809 = vmatmul.mubr.f32.gmra.mxu0 %v715
        %v810 = vpop.f32.mrf.mxu0
        %v811 = vadd.f32 %v682, %v810
        %v812 = vpop.f32.mrf.mxu0
        %813 = vmatprep.mubr.f32.mxu0 0.0
        %814 = vmatmul.mubr.f32.gmra.mxu0 %v718
        %v815 = vpop.f32.mrf.mxu0
        %v816 = vadd.f32 %v687, %v815
        %v817 = vpop.f32.mrf.mxu0
        %818 = vmatprep.mubr.f32.mxu0 0.0
        %819 = vmatmul.mubr.f32.gmra.mxu0 %v721
        %v820 = vpop.f32.mrf.mxu0
        %v821 = vadd.f32 %v692, %v820
        %v822 = vpop.f32.mrf.mxu0
        %823 = vmatprep.mubr.f32.mxu0 0.0
        %824 = vmatmul.mubr.f32.gmra.mxu0 %v724
        %v825 = vpop.f32.mrf.mxu0
        %v826 = vadd.f32 %v697, %v825
        %v827 = vpop.f32.mrf.mxu0
        %828 = vmatprep.mubr.f32.mxu0 0.0
        %829 = vmatmul.mubr.f32.gmra.mxu0 %v727
        %v830 = vpop.f32.mrf.mxu0
        %v831 = vadd.f32 %v702, %v830
        %v832 = vpop.f32.mrf.mxu0
        %833 = vdwg.mxu0
        %v834 = vand.u32 2147483647, %v796
        %v835 = vand.u32 2147483647, %v801
        %v836 = vand.u32 2147483647, %v806
        %v837 = vand.u32 2147483647, %v811
        %v838 = vand.u32 2147483647, %v816
        %v839 = vand.u32 2147483647, %v821
        %v840 = vand.u32 2147483647, %v826
        %v841 = vand.u32 2147483647, %v831
        %v842 = vmul.f32 %v834, 2.0
        %v843 = vmul.f32 %v835, 2.0
        %v844 = vmul.f32 %v836, 2.0
        %v845 = vmul.f32 %v837, 2.0
        %v846 = vmul.f32 %v838, 2.0
        %v847 = vmul.f32 %v839, 2.0
        %v848 = vmul.f32 %v840, 2.0
        %v849 = vmul.f32 %v841, 2.0
        %v850 = vmul.f32 %v842, 1.442695
        %v851 = vpow.pop %v850
        %v852 = vmul.f32 %v843, 1.442695
        %v853 = vpow.pop %v852
        %v854 = vmul.f32 %v844, 1.442695
        %v855 = vpow.pop %v854
        %v856 = vmul.f32 %v845, 1.442695
        %v857 = vpow.pop %v856
        %v858 = vmul.f32 %v846, 1.442695
        %v859 = vpow.pop %v858
        %v860 = vmul.f32 %v847, 1.442695
        %v861 = vpow.pop %v860
        %v862 = vmul.f32 %v848, 1.442695
        %v863 = vpow.pop %v862
        %v864 = vmul.f32 %v849, 1.442695
        %v865 = vpow.pop %v864
        %v866 = vrcp.pop %v851
        %v867 = vmul.f32 1.0, %v866
        %v868 = vrcp.pop %v853
        %v869 = vmul.f32 1.0, %v868
        %v870 = vrcp.pop %v855
        %v871 = vmul.f32 1.0, %v870
        %v872 = vrcp.pop %v857
        %v873 = vmul.f32 1.0, %v872
        %v874 = vrcp.pop %v859
        %v875 = vmul.f32 1.0, %v874
        %v876 = vrcp.pop %v861
        %v877 = vmul.f32 1.0, %v876
        %v878 = vrcp.pop %v863
        %v879 = vmul.f32 1.0, %v878
        %v880 = vrcp.pop %v865
        %v881 = vmul.f32 1.0, %v880
        %v882 = vsub.f32 %v851, %v867
        %v883 = vsub.f32 %v853, %v869
        %v884 = vsub.f32 %v855, %v871
        %v885 = vsub.f32 %v857, %v873
        %v886 = vsub.f32 %v859, %v875
        %v887 = vsub.f32 %v861, %v877
        %v888 = vsub.f32 %v863, %v879
        %v889 = vsub.f32 %v865, %v881
        %v890 = vmul.f32 %v882, 0.5
        %v891 = vmul.f32 %v883, 0.5
        %v892 = vmul.f32 %v884, 0.5
        %v893 = vmul.f32 %v885, 0.5
        %v894 = vmul.f32 %v886, 0.5
        %v895 = vmul.f32 %v887, 0.5
        %v896 = vmul.f32 %v888, 0.5
        %v897 = vmul.f32 %v889, 0.5
        %vm898 = vcmp.lt.f32.partialorder %v796, 0.0
        %vm899 = vcmp.lt.f32.partialorder %v801, 0.0
        %vm900 = vcmp.lt.f32.partialorder %v806, 0.0
        %vm901 = vcmp.lt.f32.partialorder %v811, 0.0
        %vm902 = vcmp.lt.f32.partialorder %v816, 0.0
        %vm903 = vcmp.lt.f32.partialorder %v821, 0.0
        %vm904 = vcmp.lt.f32.partialorder %v826, 0.0
        %vm905 = vcmp.lt.f32.partialorder %v831, 0.0
        %v906 = vsub.f32 0.0, %v890
        %v907 = vsub.f32 0.0, %v891
        %v908 = vsub.f32 0.0, %v892
        %v909 = vsub.f32 0.0, %v893
        %v910 = vsub.f32 0.0, %v894
        %v911 = vsub.f32 0.0, %v895
        %v912 = vsub.f32 0.0, %v896
        %v913 = vsub.f32 0.0, %v897
        %v914 = vsel %vm898, %v906, %v890
        %v915 = vsel %vm899, %v907, %v891
        %v916 = vsel %vm900, %v908, %v892
        %v917 = vsel %vm901, %v909, %v893
        %v918 = vsel %vm902, %v910, %v894
        %v919 = vsel %vm903, %v911, %v895
        %v920 = vsel %vm904, %v912, %v896
        %v921 = vsel %vm905, %v913, %v897
        %v922 = vand.u32 2147483647, %v914
        %vm923 = vcmp.le.f32.partialorder %v922, 0.7853982
        %vm924 = vcmp.lt.s32.totalorder %v914, 0
        %v925 = vand.u32 %v914, 2139095040
        %v926 = vshrl.u32 %v925, 23
        %v927 = vsub.s32 %v926, 127
        %v928 = vand.u32 2147483647, %v914
        %v929 = vand.u32 %v928, 8388607
        %v930 = vor.u32 %v929, 8388608
        %v931 = vsub.s32 0, %v930
        %v932 = vadd.s32 %v927, 1
        %vm933 = vcmp.gt.s32.totalorder %v932, 0
        %v934 = vsel %vm933, %v932, 0
        %v935 = vshrl.u32 %v934, 5
        %v936 = vand.u32 %v934, 31
        %v937 = vsub.s32 32, %v936
        %v938 = vshrl.u32 683565275, %v937
        %v939 = vshll.u32 683565275, %v936
        %v940 = vshrl.u32 2475754826, %v937
        %v941 = vor.u32 %v939, %v940
        %v942 = vshll.u32 2475754826, %v936
        %v943 = vshrl.u32 2131351028, %v937
        %v944 = vor.u32 %v942, %v943
        %v945 = vshll.u32 2131351028, %v936
        %v946 = vshrl.u32 2102212464, %v937
        %v947 = vor.u32 %v945, %v946
        %v948 = vshll.u32 2102212464, %v936
        %v949 = vshrl.u32 920167782, %v937
        %v950 = vor.u32 %v948, %v949
        %v951 = vshll.u32 920167782, %v936
        %v952 = vshrl.u32 1326507024, %v937
        %v953 = vor.u32 %v951, %v952
        %vm954 = vcmp.lt.s32.totalorder %v935, 1
        %vm955 = vcmp.lt.s32.totalorder %v935, 2
        %vm956 = vcmp.lt.s32.totalorder %v935, 3
        %vm957 = vcmp.lt.s32.totalorder %v935, 4
        %v958 = vsel %vm954, %v938, %v941
        %v959 = vsel %vm957, %v947, 2102212464
        %v960 = vsel %vm956, %v944, %v959
        %v961 = vsel %vm955, %v958, %v960
        %v962 = vsel %vm954, %v941, %v944
        %v963 = vsel %vm957, %v950, 920167782
        %v964 = vsel %vm956, %v947, %v963
        %v965 = vsel %vm955, %v962, %v964
        %v966 = vsel %vm954, %v944, %v947
        %v967 = vsel %vm957, %v953, 1326507024
        %v968 = vsel %vm956, %v950, %v967
        %v969 = vsel %vm955, %v966, %v968
        %v970 = vshll.u32 %v930, 8
        %v971 = vmul.u32.u64.compose %v970, %v969
        %v972 = vextract.low.u32 %v971
        %v973 = vextract.high.u32 %v971
        %v974 = vmul.u32.u64.compose %v970, %v965
        %v975 = vextract.low.u32 %v974
        %v976 = vextract.high.u32 %v974
        %v977 = vmul.u32 %v970, %v961
        %v978 = vadd.s32 %v973, %v975
        %vm979 = vc.u32 %v973, %v975
        %v980 = vadd.s32 %v976, 1
        %v981 = vsel %vm979, %v980, %v976
        %v982 = vadd.s32 %v977, %v981
        %v983 = vadd.s32 %v982, 536870912
        %v984 = vshrl.u32 %v983, 30
        %v985 = vshll.u32 %v984, 30
        %v986 = vsub.s32 %v982, %v985
        %vm987 = vcmp.lt.s32.totalorder %v986, 0
        %v988 = vsub.s32 0, %v986
        %v989 = vsel %vm987, %v988, %v986
        %v990 = vclz %v989
        %v991 = vsub.s32 %v990, 2
        %vm992 = vcmp.gt.s32.totalorder 0, %v991
        %v993 = vsel %vm992, 0, %v991
        %v994 = vsub.s32 32, %v993
        %v995 = vshll.u32 %v986, %v993
        %v996 = vshrl.u32 %v978, %v994
        %v997 = vor.u32 %v995, %v996
        %v998 = vsub.s32 4294967266, %v993
        %v999 = vadd.s32 %v998, 127
        %v1000 = vshll.u32 %v999, 23
        %v1001 = vor.u32 4788187, %v1000
        %v1002 = vand.u32 2147483647, %v1001
        %v1004 = vcvt.s32.f32 %v997
        %v1005 = vmul.f32 %v1004, %v1002
        %v1006 = vxor.u32 %v1005, 2147483648
        %v1007 = vsel %vm924, %v1006, %v1005
        %v1008 = vsub.s32 4, %v984
        %v1009 = vsel %vm924, %v1008, %v984
        %v1010 = vsel %vm923, %v914, %v1007
        %v1011 = vsel %vm923, 0, %v1009
        %v1012 = vcosq.f32.pop %v1010
        %v1013 = vsinq.f32.pop %v1010
        %vm1014 = vweird.f32 %v914
        %v1015 = vadd.s32 %v1011, 3
        %v1016 = vand.u32 %v1015, 3
        %vm1017 = vcmp.lt.s32.totalorder %v1016, 2
        %vm1018 = vcmp.eq.s32.totalorder %v1016, 0
        %v1019 = vxor.u32 %v1013, 2147483648
        %v1020 = vsel %vm1018, %v1012, %v1019
        %vm1021 = vcmp.eq.s32.totalorder %v1016, 2
        %v1022 = vxor.u32 %v1012, 2147483648
        %v1023 = vsel %vm1021, %v1022, %v1013
        %v1024 = vsel %vm1017, %v1020, %v1023
        %v1025 = vsel %vm1014, nan, %v1024
        %v1026 = vand.u32 2147483647, %v915
        %vm1027 = vcmp.le.f32.partialorder %v1026, 0.7853982
        %vm1028 = vcmp.lt.s32.totalorder %v915, 0
        %v1029 = vand.u32 %v915, 2139095040
        %v1030 = vshrl.u32 %v1029, 23
        %v1031 = vsub.s32 %v1030, 127
        %v1032 = vand.u32 2147483647, %v915
        %v1033 = vand.u32 %v1032, 8388607
        %v1034 = vor.u32 %v1033, 8388608
        %v1035 = vsub.s32 0, %v1034
        %v1036 = vadd.s32 %v1031, 1
        %vm1037 = vcmp.gt.s32.totalorder %v1036, 0
        %v1038 = vsel %vm1037, %v1036, 0
        %v1039 = vshrl.u32 %v1038, 5
        %v1040 = vand.u32 %v1038, 31
        %v1041 = vsub.s32 32, %v1040
        %v1042 = vshrl.u32 683565275, %v1041
        %v1043 = vshll.u32 683565275, %v1040
        %v1044 = vshrl.u32 2475754826, %v1041
        %v1045 = vor.u32 %v1043, %v1044
        %v1046 = vshll.u32 2475754826, %v1040
        %v1047 = vshrl.u32 2131351028, %v1041
        %v1048 = vor.u32 %v1046, %v1047
        %v1049 = vshll.u32 2131351028, %v1040
        %v1050 = vshrl.u32 2102212464, %v1041
        %v1051 = vor.u32 %v1049, %v1050
        %v1052 = vshll.u32 2102212464, %v1040
        %v1053 = vshrl.u32 920167782, %v1041
        %v1054 = vor.u32 %v1052, %v1053
        %v1055 = vshll.u32 920167782, %v1040
        %v1056 = vshrl.u32 1326507024, %v1041
        %v1057 = vor.u32 %v1055, %v1056
        %vm1058 = vcmp.lt.s32.totalorder %v1039, 1
        %vm1059 = vcmp.lt.s32.totalorder %v1039, 2
        %vm1060 = vcmp.lt.s32.totalorder %v1039, 3
        %vm1061 = vcmp.lt.s32.totalorder %v1039, 4
        %v1062 = vsel %vm1058, %v1042, %v1045
        %v1063 = vsel %vm1061, %v1051, 2102212464
        %v1064 = vsel %vm1060, %v1048, %v1063
        %v1065 = vsel %vm1059, %v1062, %v1064
        %v1066 = vsel %vm1058, %v1045, %v1048
        %v1067 = vsel %vm1061, %v1054, 920167782
        %v1068 = vsel %vm1060, %v1051, %v1067
        %v1069 = vsel %vm1059, %v1066, %v1068
        %v1070 = vsel %vm1058, %v1048, %v1051
        %v1071 = vsel %vm1061, %v1057, 1326507024
        %v1072 = vsel %vm1060, %v1054, %v1071
        %v1073 = vsel %vm1059, %v1070, %v1072
        %v1074 = vshll.u32 %v1034, 8
        %v1075 = vmul.u32.u64.compose %v1074, %v1073
        %v1076 = vextract.low.u32 %v1075
        %v1077 = vextract.high.u32 %v1075
        %v1078 = vmul.u32.u64.compose %v1074, %v1069
        %v1079 = vextract.low.u32 %v1078
        %v1080 = vextract.high.u32 %v1078
        %v1081 = vmul.u32 %v1074, %v1065
        %v1082 = vadd.s32 %v1077, %v1079
        %vm1083 = vc.u32 %v1077, %v1079
        %v1084 = vadd.s32 %v1080, 1
        %v1085 = vsel %vm1083, %v1084, %v1080
        %v1086 = vadd.s32 %v1081, %v1085
        %v1087 = vadd.s32 %v1086, 536870912
        %v1088 = vshrl.u32 %v1087, 30
        %v1089 = vshll.u32 %v1088, 30
        %v1090 = vsub.s32 %v1086, %v1089
        %vm1091 = vcmp.lt.s32.totalorder %v1090, 0
        %v1092 = vsub.s32 0, %v1090
        %v1093 = vsel %vm1091, %v1092, %v1090
        %v1094 = vclz %v1093
        %v1095 = vsub.s32 %v1094, 2
        %vm1096 = vcmp.gt.s32.totalorder 0, %v1095
        %v1097 = vsel %vm1096, 0, %v1095
        %v1098 = vsub.s32 32, %v1097
        %v1099 = vshll.u32 %v1090, %v1097
        %v1100 = vshrl.u32 %v1082, %v1098
        %v1101 = vor.u32 %v1099, %v1100
        %v1102 = vsub.s32 4294967266, %v1097
        %v1103 = vadd.s32 %v1102, 127
        %v1104 = vshll.u32 %v1103, 23
        %v1105 = vor.u32 4788187, %v1104
        %v1106 = vand.u32 2147483647, %v1105
        %v1108 = vcvt.s32.f32 %v1101
        %v1109 = vmul.f32 %v1108, %v1106
        %v1110 = vxor.u32 %v1109, 2147483648
        %v1111 = vsel %vm1028, %v1110, %v1109
        %v1112 = vsub.s32 4, %v1088
        %v1113 = vsel %vm1028, %v1112, %v1088
        %v1114 = vsel %vm1027, %v915, %v1111
        %v1115 = vsel %vm1027, 0, %v1113
        %v1116 = vcosq.f32.pop %v1114
        %v1117 = vsinq.f32.pop %v1114
        %vm1118 = vweird.f32 %v915
        %v1119 = vadd.s32 %v1115, 3
        %v1120 = vand.u32 %v1119, 3
        %vm1121 = vcmp.lt.s32.totalorder %v1120, 2
        %vm1122 = vcmp.eq.s32.totalorder %v1120, 0
        %v1123 = vxor.u32 %v1117, 2147483648
        %v1124 = vsel %vm1122, %v1116, %v1123
        %vm1125 = vcmp.eq.s32.totalorder %v1120, 2
        %v1126 = vxor.u32 %v1116, 2147483648
        %v1127 = vsel %vm1125, %v1126, %v1117
        %v1128 = vsel %vm1121, %v1124, %v1127
        %v1129 = vsel %vm1118, nan, %v1128
        %v1130 = vand.u32 2147483647, %v916
        %vm1131 = vcmp.le.f32.partialorder %v1130, 0.7853982
        %vm1132 = vcmp.lt.s32.totalorder %v916, 0
        %v1133 = vand.u32 %v916, 2139095040
        %v1134 = vshrl.u32 %v1133, 23
        %v1135 = vsub.s32 %v1134, 127
        %v1136 = vand.u32 2147483647, %v916
        %v1137 = vand.u32 %v1136, 8388607
        %v1138 = vor.u32 %v1137, 8388608
        %v1139 = vsub.s32 0, %v1138
        %v1140 = vadd.s32 %v1135, 1
        %vm1141 = vcmp.gt.s32.totalorder %v1140, 0
        %v1142 = vsel %vm1141, %v1140, 0
        %v1143 = vshrl.u32 %v1142, 5
        %v1144 = vand.u32 %v1142, 31
        %v1145 = vsub.s32 32, %v1144
        %v1146 = vshrl.u32 683565275, %v1145
        %v1147 = vshll.u32 683565275, %v1144
        %v1148 = vshrl.u32 2475754826, %v1145
        %v1149 = vor.u32 %v1147, %v1148
        %v1150 = vshll.u32 2475754826, %v1144
        %v1151 = vshrl.u32 2131351028, %v1145
        %v1152 = vor.u32 %v1150, %v1151
        %v1153 = vshll.u32 2131351028, %v1144
        %v1154 = vshrl.u32 2102212464, %v1145
        %v1155 = vor.u32 %v1153, %v1154
        %v1156 = vshll.u32 2102212464, %v1144
        %v1157 = vshrl.u32 920167782, %v1145
        %v1158 = vor.u32 %v1156, %v1157
        %v1159 = vshll.u32 920167782, %v1144
        %v1160 = vshrl.u32 1326507024, %v1145
        %v1161 = vor.u32 %v1159, %v1160
        %vm1162 = vcmp.lt.s32.totalorder %v1143, 1
        %vm1163 = vcmp.lt.s32.totalorder %v1143, 2
        %vm1164 = vcmp.lt.s32.totalorder %v1143, 3
        %vm1165 = vcmp.lt.s32.totalorder %v1143, 4
        %v1166 = vsel %vm1162, %v1146, %v1149
        %v1167 = vsel %vm1165, %v1155, 2102212464
        %v1168 = vsel %vm1164, %v1152, %v1167
        %v1169 = vsel %vm1163, %v1166, %v1168
        %v1170 = vsel %vm1162, %v1149, %v1152
        %v1171 = vsel %vm1165, %v1158, 920167782
        %v1172 = vsel %vm1164, %v1155, %v1171
        %v1173 = vsel %vm1163, %v1170, %v1172
        %v1174 = vsel %vm1162, %v1152, %v1155
        %v1175 = vsel %vm1165, %v1161, 1326507024
        %v1176 = vsel %vm1164, %v1158, %v1175
        %v1177 = vsel %vm1163, %v1174, %v1176
        %v1178 = vshll.u32 %v1138, 8
        %v1179 = vmul.u32.u64.compose %v1178, %v1177
        %v1180 = vextract.low.u32 %v1179
        %v1181 = vextract.high.u32 %v1179
        %v1182 = vmul.u32.u64.compose %v1178, %v1173
        %v1183 = vextract.low.u32 %v1182
        %v1184 = vextract.high.u32 %v1182
        %v1185 = vmul.u32 %v1178, %v1169
        %v1186 = vadd.s32 %v1181, %v1183
        %vm1187 = vc.u32 %v1181, %v1183
        %v1188 = vadd.s32 %v1184, 1
        %v1189 = vsel %vm1187, %v1188, %v1184
        %v1190 = vadd.s32 %v1185, %v1189
        %v1191 = vadd.s32 %v1190, 536870912
        %v1192 = vshrl.u32 %v1191, 30
        %v1193 = vshll.u32 %v1192, 30
        %v1194 = vsub.s32 %v1190, %v1193
        %vm1195 = vcmp.lt.s32.totalorder %v1194, 0
        %v1196 = vsub.s32 0, %v1194
        %v1197 = vsel %vm1195, %v1196, %v1194
        %v1198 = vclz %v1197
        %v1199 = vsub.s32 %v1198, 2
        %vm1200 = vcmp.gt.s32.totalorder 0, %v1199
        %v1201 = vsel %vm1200, 0, %v1199
        %v1202 = vsub.s32 32, %v1201
        %v1203 = vshll.u32 %v1194, %v1201
        %v1204 = vshrl.u32 %v1186, %v1202
        %v1205 = vor.u32 %v1203, %v1204
        %v1206 = vsub.s32 4294967266, %v1201
        %v1207 = vadd.s32 %v1206, 127
        %v1208 = vshll.u32 %v1207, 23
        %v1209 = vor.u32 4788187, %v1208
        %v1210 = vand.u32 2147483647, %v1209
        %v1212 = vcvt.s32.f32 %v1205
        %v1213 = vmul.f32 %v1212, %v1210
        %v1214 = vxor.u32 %v1213, 2147483648
        %v1215 = vsel %vm1132, %v1214, %v1213
        %v1216 = vsub.s32 4, %v1192
        %v1217 = vsel %vm1132, %v1216, %v1192
        %v1218 = vsel %vm1131, %v916, %v1215
        %v1219 = vsel %vm1131, 0, %v1217
        %v1220 = vcosq.f32.pop %v1218
        %v1221 = vsinq.f32.pop %v1218
        %vm1222 = vweird.f32 %v916
        %v1223 = vadd.s32 %v1219, 3
        %v1224 = vand.u32 %v1223, 3
        %vm1225 = vcmp.lt.s32.totalorder %v1224, 2
        %vm1226 = vcmp.eq.s32.totalorder %v1224, 0
        %v1227 = vxor.u32 %v1221, 2147483648
        %v1228 = vsel %vm1226, %v1220, %v1227
        %vm1229 = vcmp.eq.s32.totalorder %v1224, 2
        %v1230 = vxor.u32 %v1220, 2147483648
        %v1231 = vsel %vm1229, %v1230, %v1221
        %v1232 = vsel %vm1225, %v1228, %v1231
        %v1233 = vsel %vm1222, nan, %v1232
        %v1234 = vand.u32 2147483647, %v917
        %vm1235 = vcmp.le.f32.partialorder %v1234, 0.7853982
        %vm1236 = vcmp.lt.s32.totalorder %v917, 0
        %v1237 = vand.u32 %v917, 2139095040
        %v1238 = vshrl.u32 %v1237, 23
        %v1239 = vsub.s32 %v1238, 127
        %v1240 = vand.u32 2147483647, %v917
        %v1241 = vand.u32 %v1240, 8388607
        %v1242 = vor.u32 %v1241, 8388608
        %v1243 = vsub.s32 0, %v1242
        %v1244 = vadd.s32 %v1239, 1
        %vm1245 = vcmp.gt.s32.totalorder %v1244, 0
        %v1246 = vsel %vm1245, %v1244, 0
        %v1247 = vshrl.u32 %v1246, 5
        %v1248 = vand.u32 %v1246, 31
        %v1249 = vsub.s32 32, %v1248
        %v1250 = vshrl.u32 683565275, %v1249
        %v1251 = vshll.u32 683565275, %v1248
        %v1252 = vshrl.u32 2475754826, %v1249
        %v1253 = vor.u32 %v1251, %v1252
        %v1254 = vshll.u32 2475754826, %v1248
        %v1255 = vshrl.u32 2131351028, %v1249
        %v1256 = vor.u32 %v1254, %v1255
        %v1257 = vshll.u32 2131351028, %v1248
        %v1258 = vshrl.u32 2102212464, %v1249
        %v1259 = vor.u32 %v1257, %v1258
        %v1260 = vshll.u32 2102212464, %v1248
        %v1261 = vshrl.u32 920167782, %v1249
        %v1262 = vor.u32 %v1260, %v1261
        %v1263 = vshll.u32 920167782, %v1248
        %v1264 = vshrl.u32 1326507024, %v1249
        %v1265 = vor.u32 %v1263, %v1264
        %vm1266 = vcmp.lt.s32.totalorder %v1247, 1
        %vm1267 = vcmp.lt.s32.totalorder %v1247, 2
        %vm1268 = vcmp.lt.s32.totalorder %v1247, 3
        %vm1269 = vcmp.lt.s32.totalorder %v1247, 4
        %v1270 = vsel %vm1266, %v1250, %v1253
        %v1271 = vsel %vm1269, %v1259, 2102212464
        %v1272 = vsel %vm1268, %v1256, %v1271
        %v1273 = vsel %vm1267, %v1270, %v1272
        %v1274 = vsel %vm1266, %v1253, %v1256
        %v1275 = vsel %vm1269, %v1262, 920167782
        %v1276 = vsel %vm1268, %v1259, %v1275
        %v1277 = vsel %vm1267, %v1274, %v1276
        %v1278 = vsel %vm1266, %v1256, %v1259
        %v1279 = vsel %vm1269, %v1265, 1326507024
        %v1280 = vsel %vm1268, %v1262, %v1279
        %v1281 = vsel %vm1267, %v1278, %v1280
        %v1282 = vshll.u32 %v1242, 8
        %v1283 = vmul.u32.u64.compose %v1282, %v1281
        %v1284 = vextract.low.u32 %v1283
        %v1285 = vextract.high.u32 %v1283
        %v1286 = vmul.u32.u64.compose %v1282, %v1277
        %v1287 = vextract.low.u32 %v1286
        %v1288 = vextract.high.u32 %v1286
        %v1289 = vmul.u32 %v1282, %v1273
        %v1290 = vadd.s32 %v1285, %v1287
        %vm1291 = vc.u32 %v1285, %v1287
        %v1292 = vadd.s32 %v1288, 1
        %v1293 = vsel %vm1291, %v1292, %v1288
        %v1294 = vadd.s32 %v1289, %v1293
        %v1295 = vadd.s32 %v1294, 536870912
        %v1296 = vshrl.u32 %v1295, 30
        %v1297 = vshll.u32 %v1296, 30
        %v1298 = vsub.s32 %v1294, %v1297
        %vm1299 = vcmp.lt.s32.totalorder %v1298, 0
        %v1300 = vsub.s32 0, %v1298
        %v1301 = vsel %vm1299, %v1300, %v1298
        %v1302 = vclz %v1301
        %v1303 = vsub.s32 %v1302, 2
        %vm1304 = vcmp.gt.s32.totalorder 0, %v1303
        %v1305 = vsel %vm1304, 0, %v1303
        %v1306 = vsub.s32 32, %v1305
        %v1307 = vshll.u32 %v1298, %v1305
        %v1308 = vshrl.u32 %v1290, %v1306
        %v1309 = vor.u32 %v1307, %v1308
        %v1310 = vsub.s32 4294967266, %v1305
        %v1311 = vadd.s32 %v1310, 127
        %v1312 = vshll.u32 %v1311, 23
        %v1313 = vor.u32 4788187, %v1312
        %v1314 = vand.u32 2147483647, %v1313
        %v1316 = vcvt.s32.f32 %v1309
        %v1317 = vmul.f32 %v1316, %v1314
        %v1318 = vxor.u32 %v1317, 2147483648
        %v1319 = vsel %vm1236, %v1318, %v1317
        %v1320 = vsub.s32 4, %v1296
        %v1321 = vsel %vm1236, %v1320, %v1296
        %v1322 = vsel %vm1235, %v917, %v1319
        %v1323 = vsel %vm1235, 0, %v1321
        %v1324 = vcosq.f32.pop %v1322
        %v1325 = vsinq.f32.pop %v1322
        %vm1326 = vweird.f32 %v917
        %v1327 = vadd.s32 %v1323, 3
        %v1328 = vand.u32 %v1327, 3
        %vm1329 = vcmp.lt.s32.totalorder %v1328, 2
        %vm1330 = vcmp.eq.s32.totalorder %v1328, 0
        %v1331 = vxor.u32 %v1325, 2147483648
        %v1332 = vsel %vm1330, %v1324, %v1331
        %vm1333 = vcmp.eq.s32.totalorder %v1328, 2
        %v1334 = vxor.u32 %v1324, 2147483648
        %v1335 = vsel %vm1333, %v1334, %v1325
        %v1336 = vsel %vm1329, %v1332, %v1335
        %v1337 = vsel %vm1326, nan, %v1336
        %v1338 = vand.u32 2147483647, %v918
        %vm1339 = vcmp.le.f32.partialorder %v1338, 0.7853982
        %vm1340 = vcmp.lt.s32.totalorder %v918, 0
        %v1341 = vand.u32 %v918, 2139095040
        %v1342 = vshrl.u32 %v1341, 23
        %v1343 = vsub.s32 %v1342, 127
        %v1344 = vand.u32 2147483647, %v918
        %v1345 = vand.u32 %v1344, 8388607
        %v1346 = vor.u32 %v1345, 8388608
        %v1347 = vsub.s32 0, %v1346
        %v1348 = vadd.s32 %v1343, 1
        %vm1349 = vcmp.gt.s32.totalorder %v1348, 0
        %v1350 = vsel %vm1349, %v1348, 0
        %v1351 = vshrl.u32 %v1350, 5
        %v1352 = vand.u32 %v1350, 31
        %v1353 = vsub.s32 32, %v1352
        %v1354 = vshrl.u32 683565275, %v1353
        %v1355 = vshll.u32 683565275, %v1352
        %v1356 = vshrl.u32 2475754826, %v1353
        %v1357 = vor.u32 %v1355, %v1356
        %v1358 = vshll.u32 2475754826, %v1352
        %v1359 = vshrl.u32 2131351028, %v1353
        %v1360 = vor.u32 %v1358, %v1359
        %v1361 = vshll.u32 2131351028, %v1352
        %v1362 = vshrl.u32 2102212464, %v1353
        %v1363 = vor.u32 %v1361, %v1362
        %v1364 = vshll.u32 2102212464, %v1352
        %v1365 = vshrl.u32 920167782, %v1353
        %v1366 = vor.u32 %v1364, %v1365
        %v1367 = vshll.u32 920167782, %v1352
        %v1368 = vshrl.u32 1326507024, %v1353
        %v1369 = vor.u32 %v1367, %v1368
        %vm1370 = vcmp.lt.s32.totalorder %v1351, 1
        %vm1371 = vcmp.lt.s32.totalorder %v1351, 2
        %vm1372 = vcmp.lt.s32.totalorder %v1351, 3
        %vm1373 = vcmp.lt.s32.totalorder %v1351, 4
        %v1374 = vsel %vm1370, %v1354, %v1357
        %v1375 = vsel %vm1373, %v1363, 2102212464
        %v1376 = vsel %vm1372, %v1360, %v1375
        %v1377 = vsel %vm1371, %v1374, %v1376
        %v1378 = vsel %vm1370, %v1357, %v1360
        %v1379 = vsel %vm1373, %v1366, 920167782
        %v1380 = vsel %vm1372, %v1363, %v1379
        %v1381 = vsel %vm1371, %v1378, %v1380
        %v1382 = vsel %vm1370, %v1360, %v1363
        %v1383 = vsel %vm1373, %v1369, 1326507024
        %v1384 = vsel %vm1372, %v1366, %v1383
        %v1385 = vsel %vm1371, %v1382, %v1384
        %v1386 = vshll.u32 %v1346, 8
        %v1387 = vmul.u32.u64.compose %v1386, %v1385
        %v1388 = vextract.low.u32 %v1387
        %v1389 = vextract.high.u32 %v1387
        %v1390 = vmul.u32.u64.compose %v1386, %v1381
        %v1391 = vextract.low.u32 %v1390
        %v1392 = vextract.high.u32 %v1390
        %v1393 = vmul.u32 %v1386, %v1377
        %v1394 = vadd.s32 %v1389, %v1391
        %vm1395 = vc.u32 %v1389, %v1391
        %v1396 = vadd.s32 %v1392, 1
        %v1397 = vsel %vm1395, %v1396, %v1392
        %v1398 = vadd.s32 %v1393, %v1397
        %v1399 = vadd.s32 %v1398, 536870912
        %v1400 = vshrl.u32 %v1399, 30
        %v1401 = vshll.u32 %v1400, 30
        %v1402 = vsub.s32 %v1398, %v1401
        %vm1403 = vcmp.lt.s32.totalorder %v1402, 0
        %v1404 = vsub.s32 0, %v1402
        %v1405 = vsel %vm1403, %v1404, %v1402
        %v1406 = vclz %v1405
        %v1407 = vsub.s32 %v1406, 2
        %vm1408 = vcmp.gt.s32.totalorder 0, %v1407
        %v1409 = vsel %vm1408, 0, %v1407
        %v1410 = vsub.s32 32, %v1409
        %v1411 = vshll.u32 %v1402, %v1409
        %v1412 = vshrl.u32 %v1394, %v1410
        %v1413 = vor.u32 %v1411, %v1412
        %v1414 = vsub.s32 4294967266, %v1409
        %v1415 = vadd.s32 %v1414, 127
        %v1416 = vshll.u32 %v1415, 23
        %v1417 = vor.u32 4788187, %v1416
        %v1418 = vand.u32 2147483647, %v1417
        %v1420 = vcvt.s32.f32 %v1413
        %v1421 = vmul.f32 %v1420, %v1418
        %v1422 = vxor.u32 %v1421, 2147483648
        %v1423 = vsel %vm1340, %v1422, %v1421
        %v1424 = vsub.s32 4, %v1400
        %v1425 = vsel %vm1340, %v1424, %v1400
        %v1426 = vsel %vm1339, %v918, %v1423
        %v1427 = vsel %vm1339, 0, %v1425
        %v1428 = vcosq.f32.pop %v1426
        %v1429 = vsinq.f32.pop %v1426
        %vm1430 = vweird.f32 %v918
        %v1431 = vadd.s32 %v1427, 3
        %v1432 = vand.u32 %v1431, 3
        %vm1433 = vcmp.lt.s32.totalorder %v1432, 2
        %vm1434 = vcmp.eq.s32.totalorder %v1432, 0
        %v1435 = vxor.u32 %v1429, 2147483648
        %v1436 = vsel %vm1434, %v1428, %v1435
        %vm1437 = vcmp.eq.s32.totalorder %v1432, 2
        %v1438 = vxor.u32 %v1428, 2147483648
        %v1439 = vsel %vm1437, %v1438, %v1429
        %v1440 = vsel %vm1433, %v1436, %v1439
        %v1441 = vsel %vm1430, nan, %v1440
        %v1442 = vand.u32 2147483647, %v919
        %vm1443 = vcmp.le.f32.partialorder %v1442, 0.7853982
        %vm1444 = vcmp.lt.s32.totalorder %v919, 0
        %v1445 = vand.u32 %v919, 2139095040
        %v1446 = vshrl.u32 %v1445, 23
        %v1447 = vsub.s32 %v1446, 127
        %v1448 = vand.u32 2147483647, %v919
        %v1449 = vand.u32 %v1448, 8388607
        %v1450 = vor.u32 %v1449, 8388608
        %v1451 = vsub.s32 0, %v1450
        %v1452 = vadd.s32 %v1447, 1
        %vm1453 = vcmp.gt.s32.totalorder %v1452, 0
        %v1454 = vsel %vm1453, %v1452, 0
        %v1455 = vshrl.u32 %v1454, 5
        %v1456 = vand.u32 %v1454, 31
        %v1457 = vsub.s32 32, %v1456
        %v1458 = vshrl.u32 683565275, %v1457
        %v1459 = vshll.u32 683565275, %v1456
        %v1460 = vshrl.u32 2475754826, %v1457
        %v1461 = vor.u32 %v1459, %v1460
        %v1462 = vshll.u32 2475754826, %v1456
        %v1463 = vshrl.u32 2131351028, %v1457
        %v1464 = vor.u32 %v1462, %v1463
        %v1465 = vshll.u32 2131351028, %v1456
        %v1466 = vshrl.u32 2102212464, %v1457
        %v1467 = vor.u32 %v1465, %v1466
        %v1468 = vshll.u32 2102212464, %v1456
        %v1469 = vshrl.u32 920167782, %v1457
        %v1470 = vor.u32 %v1468, %v1469
        %v1471 = vshll.u32 920167782, %v1456
        %v1472 = vshrl.u32 1326507024, %v1457
        %v1473 = vor.u32 %v1471, %v1472
        %vm1474 = vcmp.lt.s32.totalorder %v1455, 1
        %vm1475 = vcmp.lt.s32.totalorder %v1455, 2
        %vm1476 = vcmp.lt.s32.totalorder %v1455, 3
        %vm1477 = vcmp.lt.s32.totalorder %v1455, 4
        %v1478 = vsel %vm1474, %v1458, %v1461
        %v1479 = vsel %vm1477, %v1467, 2102212464
        %v1480 = vsel %vm1476, %v1464, %v1479
        %v1481 = vsel %vm1475, %v1478, %v1480
        %v1482 = vsel %vm1474, %v1461, %v1464
        %v1483 = vsel %vm1477, %v1470, 920167782
        %v1484 = vsel %vm1476, %v1467, %v1483
        %v1485 = vsel %vm1475, %v1482, %v1484
        %v1486 = vsel %vm1474, %v1464, %v1467
        %v1487 = vsel %vm1477, %v1473, 1326507024
        %v1488 = vsel %vm1476, %v1470, %v1487
        %v1489 = vsel %vm1475, %v1486, %v1488
        %v1490 = vshll.u32 %v1450, 8
        %v1491 = vmul.u32.u64.compose %v1490, %v1489
        %v1492 = vextract.low.u32 %v1491
        %v1493 = vextract.high.u32 %v1491
        %v1494 = vmul.u32.u64.compose %v1490, %v1485
        %v1495 = vextract.low.u32 %v1494
        %v1496 = vextract.high.u32 %v1494
        %v1497 = vmul.u32 %v1490, %v1481
        %v1498 = vadd.s32 %v1493, %v1495
        %vm1499 = vc.u32 %v1493, %v1495
        %v1500 = vadd.s32 %v1496, 1
        %v1501 = vsel %vm1499, %v1500, %v1496
        %v1502 = vadd.s32 %v1497, %v1501
        %v1503 = vadd.s32 %v1502, 536870912
        %v1504 = vshrl.u32 %v1503, 30
        %v1505 = vshll.u32 %v1504, 30
        %v1506 = vsub.s32 %v1502, %v1505
        %vm1507 = vcmp.lt.s32.totalorder %v1506, 0
        %v1508 = vsub.s32 0, %v1506
        %v1509 = vsel %vm1507, %v1508, %v1506
        %v1510 = vclz %v1509
        %v1511 = vsub.s32 %v1510, 2
        %vm1512 = vcmp.gt.s32.totalorder 0, %v1511
        %v1513 = vsel %vm1512, 0, %v1511
        %v1514 = vsub.s32 32, %v1513
        %v1515 = vshll.u32 %v1506, %v1513
        %v1516 = vshrl.u32 %v1498, %v1514
        %v1517 = vor.u32 %v1515, %v1516
        %v1518 = vsub.s32 4294967266, %v1513
        %v1519 = vadd.s32 %v1518, 127
        %v1520 = vshll.u32 %v1519, 23
        %v1521 = vor.u32 4788187, %v1520
        %v1522 = vand.u32 2147483647, %v1521
        %v1524 = vcvt.s32.f32 %v1517
        %v1525 = vmul.f32 %v1524, %v1522
        %v1526 = vxor.u32 %v1525, 2147483648
        %v1527 = vsel %vm1444, %v1526, %v1525
        %v1528 = vsub.s32 4, %v1504
        %v1529 = vsel %vm1444, %v1528, %v1504
        %v1530 = vsel %vm1443, %v919, %v1527
        %v1531 = vsel %vm1443, 0, %v1529
        %v1532 = vcosq.f32.pop %v1530
        %v1533 = vsinq.f32.pop %v1530
        %vm1534 = vweird.f32 %v919
        %v1535 = vadd.s32 %v1531, 3
        %v1536 = vand.u32 %v1535, 3
        %vm1537 = vcmp.lt.s32.totalorder %v1536, 2
        %vm1538 = vcmp.eq.s32.totalorder %v1536, 0
        %v1539 = vxor.u32 %v1533, 2147483648
        %v1540 = vsel %vm1538, %v1532, %v1539
        %vm1541 = vcmp.eq.s32.totalorder %v1536, 2
        %v1542 = vxor.u32 %v1532, 2147483648
        %v1543 = vsel %vm1541, %v1542, %v1533
        %v1544 = vsel %vm1537, %v1540, %v1543
        %v1545 = vsel %vm1534, nan, %v1544
        %v1546 = vand.u32 2147483647, %v920
        %vm1547 = vcmp.le.f32.partialorder %v1546, 0.7853982
        %vm1548 = vcmp.lt.s32.totalorder %v920, 0
        %v1549 = vand.u32 %v920, 2139095040
        %v1550 = vshrl.u32 %v1549, 23
        %v1551 = vsub.s32 %v1550, 127
        %v1552 = vand.u32 2147483647, %v920
        %v1553 = vand.u32 %v1552, 8388607
        %v1554 = vor.u32 %v1553, 8388608
        %v1555 = vsub.s32 0, %v1554
        %v1556 = vadd.s32 %v1551, 1
        %vm1557 = vcmp.gt.s32.totalorder %v1556, 0
        %v1558 = vsel %vm1557, %v1556, 0
        %v1559 = vshrl.u32 %v1558, 5
        %v1560 = vand.u32 %v1558, 31
        %v1561 = vsub.s32 32, %v1560
        %v1562 = vshrl.u32 683565275, %v1561
        %v1563 = vshll.u32 683565275, %v1560
        %v1564 = vshrl.u32 2475754826, %v1561
        %v1565 = vor.u32 %v1563, %v1564
        %v1566 = vshll.u32 2475754826, %v1560
        %v1567 = vshrl.u32 2131351028, %v1561
        %v1568 = vor.u32 %v1566, %v1567
        %v1569 = vshll.u32 2131351028, %v1560
        %v1570 = vshrl.u32 2102212464, %v1561
        %v1571 = vor.u32 %v1569, %v1570
        %v1572 = vshll.u32 2102212464, %v1560
        %v1573 = vshrl.u32 920167782, %v1561
        %v1574 = vor.u32 %v1572, %v1573
        %v1575 = vshll.u32 920167782, %v1560
        %v1576 = vshrl.u32 1326507024, %v1561
        %v1577 = vor.u32 %v1575, %v1576
        %vm1578 = vcmp.lt.s32.totalorder %v1559, 1
        %vm1579 = vcmp.lt.s32.totalorder %v1559, 2
        %vm1580 = vcmp.lt.s32.totalorder %v1559, 3
        %vm1581 = vcmp.lt.s32.totalorder %v1559, 4
        %v1582 = vsel %vm1578, %v1562, %v1565
        %v1583 = vsel %vm1581, %v1571, 2102212464
        %v1584 = vsel %vm1580, %v1568, %v1583
        %v1585 = vsel %vm1579, %v1582, %v1584
        %v1586 = vsel %vm1578, %v1565, %v1568
        %v1587 = vsel %vm1581, %v1574, 920167782
        %v1588 = vsel %vm1580, %v1571, %v1587
        %v1589 = vsel %vm1579, %v1586, %v1588
        %v1590 = vsel %vm1578, %v1568, %v1571
        %v1591 = vsel %vm1581, %v1577, 1326507024
        %v1592 = vsel %vm1580, %v1574, %v1591
        %v1593 = vsel %vm1579, %v1590, %v1592
        %v1594 = vshll.u32 %v1554, 8
        %v1595 = vmul.u32.u64.compose %v1594, %v1593
        %v1596 = vextract.low.u32 %v1595
        %v1597 = vextract.high.u32 %v1595
        %v1598 = vmul.u32.u64.compose %v1594, %v1589
        %v1599 = vextract.low.u32 %v1598
        %v1600 = vextract.high.u32 %v1598
        %v1601 = vmul.u32 %v1594, %v1585
        %v1602 = vadd.s32 %v1597, %v1599
        %vm1603 = vc.u32 %v1597, %v1599
        %v1604 = vadd.s32 %v1600, 1
        %v1605 = vsel %vm1603, %v1604, %v1600
        %v1606 = vadd.s32 %v1601, %v1605
        %v1607 = vadd.s32 %v1606, 536870912
        %v1608 = vshrl.u32 %v1607, 30
        %v1609 = vshll.u32 %v1608, 30
        %v1610 = vsub.s32 %v1606, %v1609
        %vm1611 = vcmp.lt.s32.totalorder %v1610, 0
        %v1612 = vsub.s32 0, %v1610
        %v1613 = vsel %vm1611, %v1612, %v1610
        %v1614 = vclz %v1613
        %v1615 = vsub.s32 %v1614, 2
        %vm1616 = vcmp.gt.s32.totalorder 0, %v1615
        %v1617 = vsel %vm1616, 0, %v1615
        %v1618 = vsub.s32 32, %v1617
        %v1619 = vshll.u32 %v1610, %v1617
        %v1620 = vshrl.u32 %v1602, %v1618
        %v1621 = vor.u32 %v1619, %v1620
        %v1622 = vsub.s32 4294967266, %v1617
        %v1623 = vadd.s32 %v1622, 127
        %v1624 = vshll.u32 %v1623, 23
        %v1625 = vor.u32 4788187, %v1624
        %v1626 = vand.u32 2147483647, %v1625
        %v1628 = vcvt.s32.f32 %v1621
        %v1629 = vmul.f32 %v1628, %v1626
        %v1630 = vxor.u32 %v1629, 2147483648
        %v1631 = vsel %vm1548, %v1630, %v1629
        %v1632 = vsub.s32 4, %v1608
        %v1633 = vsel %vm1548, %v1632, %v1608
        %v1634 = vsel %vm1547, %v920, %v1631
        %v1635 = vsel %vm1547, 0, %v1633
        %v1636 = vcosq.f32.pop %v1634
        %v1637 = vsinq.f32.pop %v1634
        %vm1638 = vweird.f32 %v920
        %v1639 = vadd.s32 %v1635, 3
        %v1640 = vand.u32 %v1639, 3
        %vm1641 = vcmp.lt.s32.totalorder %v1640, 2
        %vm1642 = vcmp.eq.s32.totalorder %v1640, 0
        %v1643 = vxor.u32 %v1637, 2147483648
        %v1644 = vsel %vm1642, %v1636, %v1643
        %vm1645 = vcmp.eq.s32.totalorder %v1640, 2
        %v1646 = vxor.u32 %v1636, 2147483648
        %v1647 = vsel %vm1645, %v1646, %v1637
        %v1648 = vsel %vm1641, %v1644, %v1647
        %v1649 = vsel %vm1638, nan, %v1648
        %v1650 = vand.u32 2147483647, %v921
        %vm1651 = vcmp.le.f32.partialorder %v1650, 0.7853982
        %vm1652 = vcmp.lt.s32.totalorder %v921, 0
        %v1653 = vand.u32 %v921, 2139095040
        %v1654 = vshrl.u32 %v1653, 23
        %v1655 = vsub.s32 %v1654, 127
        %v1656 = vand.u32 2147483647, %v921
        %v1657 = vand.u32 %v1656, 8388607
        %v1658 = vor.u32 %v1657, 8388608
        %v1659 = vsub.s32 0, %v1658
        %v1660 = vadd.s32 %v1655, 1
        %vm1661 = vcmp.gt.s32.totalorder %v1660, 0
        %v1662 = vsel %vm1661, %v1660, 0
        %v1663 = vshrl.u32 %v1662, 5
        %v1664 = vand.u32 %v1662, 31
        %v1665 = vsub.s32 32, %v1664
        %v1666 = vshrl.u32 683565275, %v1665
        %v1667 = vshll.u32 683565275, %v1664
        %v1668 = vshrl.u32 2475754826, %v1665
        %v1669 = vor.u32 %v1667, %v1668
        %v1670 = vshll.u32 2475754826, %v1664
        %v1671 = vshrl.u32 2131351028, %v1665
        %v1672 = vor.u32 %v1670, %v1671
        %v1673 = vshll.u32 2131351028, %v1664
        %v1674 = vshrl.u32 2102212464, %v1665
        %v1675 = vor.u32 %v1673, %v1674
        %v1676 = vshll.u32 2102212464, %v1664
        %v1677 = vshrl.u32 920167782, %v1665
        %v1678 = vor.u32 %v1676, %v1677
        %v1679 = vshll.u32 920167782, %v1664
        %v1680 = vshrl.u32 1326507024, %v1665
        %v1681 = vor.u32 %v1679, %v1680
        %vm1682 = vcmp.lt.s32.totalorder %v1663, 1
        %vm1683 = vcmp.lt.s32.totalorder %v1663, 2
        %vm1684 = vcmp.lt.s32.totalorder %v1663, 3
        %vm1685 = vcmp.lt.s32.totalorder %v1663, 4
        %v1686 = vsel %vm1682, %v1666, %v1669
        %v1687 = vsel %vm1685, %v1675, 2102212464
        %v1688 = vsel %vm1684, %v1672, %v1687
        %v1689 = vsel %vm1683, %v1686, %v1688
        %v1690 = vsel %vm1682, %v1669, %v1672
        %v1691 = vsel %vm1685, %v1678, 920167782
        %v1692 = vsel %vm1684, %v1675, %v1691
        %v1693 = vsel %vm1683, %v1690, %v1692
        %v1694 = vsel %vm1682, %v1672, %v1675
        %v1695 = vsel %vm1685, %v1681, 1326507024
        %v1696 = vsel %vm1684, %v1678, %v1695
        %v1697 = vsel %vm1683, %v1694, %v1696
        %v1698 = vshll.u32 %v1658, 8
        %v1699 = vmul.u32.u64.compose %v1698, %v1697
        %v1700 = vextract.low.u32 %v1699
        %v1701 = vextract.high.u32 %v1699
        %v1702 = vmul.u32.u64.compose %v1698, %v1693
        %v1703 = vextract.low.u32 %v1702
        %v1704 = vextract.high.u32 %v1702
        %v1705 = vmul.u32 %v1698, %v1689
        %v1706 = vadd.s32 %v1701, %v1703
        %vm1707 = vc.u32 %v1701, %v1703
        %v1708 = vadd.s32 %v1704, 1
        %v1709 = vsel %vm1707, %v1708, %v1704
        %v1710 = vadd.s32 %v1705, %v1709
        %v1711 = vadd.s32 %v1710, 536870912
        %v1712 = vshrl.u32 %v1711, 30
        %v1713 = vshll.u32 %v1712, 30
        %v1714 = vsub.s32 %v1710, %v1713
        %vm1715 = vcmp.lt.s32.totalorder %v1714, 0
        %v1716 = vsub.s32 0, %v1714
        %v1717 = vsel %vm1715, %v1716, %v1714
        %v1718 = vclz %v1717
        %v1719 = vsub.s32 %v1718, 2
        %vm1720 = vcmp.gt.s32.totalorder 0, %v1719
        %v1721 = vsel %vm1720, 0, %v1719
        %v1722 = vsub.s32 32, %v1721
        %v1723 = vshll.u32 %v1714, %v1721
        %v1724 = vshrl.u32 %v1706, %v1722
        %v1725 = vor.u32 %v1723, %v1724
        %v1726 = vsub.s32 4294967266, %v1721
        %v1727 = vadd.s32 %v1726, 127
        %v1728 = vshll.u32 %v1727, 23
        %v1729 = vor.u32 4788187, %v1728
        %v1730 = vand.u32 2147483647, %v1729
        %v1732 = vcvt.s32.f32 %v1725
        %v1733 = vmul.f32 %v1732, %v1730
        %v1734 = vxor.u32 %v1733, 2147483648
        %v1735 = vsel %vm1652, %v1734, %v1733
        %v1736 = vsub.s32 4, %v1712
        %v1737 = vsel %vm1652, %v1736, %v1712
        %v1738 = vsel %vm1651, %v921, %v1735
        %v1739 = vsel %vm1651, 0, %v1737
        %v1740 = vcosq.f32.pop %v1738
        %v1741 = vsinq.f32.pop %v1738
        %vm1742 = vweird.f32 %v921
        %v1743 = vadd.s32 %v1739, 3
        %v1744 = vand.u32 %v1743, 3
        %vm1745 = vcmp.lt.s32.totalorder %v1744, 2
        %vm1746 = vcmp.eq.s32.totalorder %v1744, 0
        %v1747 = vxor.u32 %v1741, 2147483648
        %v1748 = vsel %vm1746, %v1740, %v1747
        %vm1749 = vcmp.eq.s32.totalorder %v1744, 2
        %v1750 = vxor.u32 %v1740, 2147483648
        %v1751 = vsel %vm1749, %v1750, %v1741
        %v1752 = vsel %vm1745, %v1748, %v1751
        %v1753 = vsel %vm1742, nan, %v1752
        %v1754 = vld [vmem:[%s3] sm:$0xff]
        %v1755 = vld [vmem:[%s4] sm:$0xff]
        %1757 = vset.pattern.permute.xlu0 0
        %1758 = vperm.xlu0 %1757, %v1755
        %v1759 = vpop.permute.xlu0 %1758
        %vm1761 = vcmask 523264
        %v1763 = vsel %vm1761, %v1754, 0
        %1765 = vmatprep.subr.mxu0 0.0
        %1766 = vmatpush1.msra.mxu0 0.0
        %1767 = vmatprep.subr.mxu0 0.0
        %1768 = vmatpush1.msra.mxu0 0.0
        %1769 = vmatprep.subr.mxu0 0.0
        %1770 = vmatpush1.msra.mxu0 0.0
        %1771 = vmatprep.subr.mxu0 0.0
        %1772 = vmatpush1.msra.mxu0 0.0
        %1773 = vmatprep.subr.mxu0 0.0
        %1774 = vmatpush1.msra.mxu0 0.0
        %1775 = vmatprep.subr.mxu0 0.0
        %1776 = vmatpush1.msra.mxu0 0.0
        %1777 = vmatprep.subr.mxu0 0.0
        %1778 = vmatpush1.msra.mxu0 0.0
        %1779 = vmatprep.subr.mxu0 0.0
        %1780 = vmatpush1.msra.mxu0 0.0
        %1781 = vmatprep.subr.mxu0 0.0
        %1782 = vmatpush1.msra.mxu0 %v1753
        %1783 = vmatprep.subr.mxu0 0.0
        %1784 = vmatpush1.msra.mxu0 %v1649
        %1785 = vmatprep.subr.mxu0 0.0
        %1786 = vmatpush1.msra.mxu0 %v1545
        %1787 = vmatprep.subr.mxu0 0.0
        %1788 = vmatpush1.msra.mxu0 %v1441
        %1789 = vmatprep.subr.mxu0 0.0
        %1790 = vmatpush1.msra.mxu0 %v1337
        %1791 = vmatprep.subr.mxu0 0.0
        %1792 = vmatpush1.msra.mxu0 %v1233
        %1793 = vmatprep.subr.mxu0 0.0
        %1794 = vmatpush1.msra.mxu0 %v1129
        %1795 = vmatprep.subr.mxu0 0.0
        %1796 = vmatpush1.msra.mxu0 %v1025
        %1797 = vmatprep.subr.mxu0 0.0
        %1798 = vmatpush2.msra.mxu0 0.0
        %1799 = vmatprep.subr.mxu0 0.0
        %1800 = vmatpush2.msra.mxu0 0.0
        %1801 = vmatprep.subr.mxu0 0.0
        %1802 = vmatpush2.msra.mxu0 0.0
        %1803 = vmatprep.subr.mxu0 0.0
        %1804 = vmatpush2.msra.mxu0 0.0
        %1805 = vmatprep.subr.mxu0 0.0
        %1806 = vmatpush2.msra.mxu0 0.0
        %1807 = vmatprep.subr.mxu0 0.0
        %1808 = vmatpush2.msra.mxu0 0.0
        %1809 = vmatprep.subr.mxu0 0.0
        %1810 = vmatpush2.msra.mxu0 0.0
        %1811 = vmatprep.subr.mxu0 0.0
        %1812 = vmatpush2.msra.mxu0 0.0
        %1813 = vmatprep.subr.mxu0 0.0
        %1814 = vmatpush2.msra.mxu0 0.0
        %1815 = vmatprep.subr.mxu0 0.0
        %1816 = vmatpush2.msra.mxu0 0.0
        %1817 = vmatprep.subr.mxu0 0.0
        %1818 = vmatpush2.msra.mxu0 0.0
        %1819 = vmatprep.subr.mxu0 0.0
        %1820 = vmatpush2.msra.mxu0 0.0
        %1821 = vmatprep.subr.mxu0 0.0
        %1822 = vmatpush2.msra.mxu0 0.0
        %1823 = vmatprep.subr.mxu0 0.0
        %1824 = vmatpush2.msra.mxu0 0.0
        %1825 = vmatprep.subr.mxu0 0.0
        %1826 = vmatpush2.msra.mxu0 0.0
        %1827 = vmatprep.subr.mxu0 0.0
        %1828 = vmatpush2.msra.mxu0 0.0
        %1829 = vmatprep.mubr.f32.mxu0 0.0
        %1830 = vmatmul.mubr.f32.gmra.mxu0 %v1763
        %v1831 = vpop.f32.mrf.mxu0
        %v1832 = vadd.f32 %v1759, %v1831
        %v1833 = vpop.f32.mrf.mxu0
        %1834 = vdwg.mxu0
        %v1835 = vand.u32 2147483647, %v1832
        %vm1836 = vcmp.le.f32.partialorder %v1835, 0.7853982
        %vm1837 = vcmp.lt.s32.totalorder %v1832, 0
        %v1838 = vand.u32 %v1832, 2139095040
        %v1839 = vshrl.u32 %v1838, 23
        %v1840 = vsub.s32 %v1839, 127
        %v1841 = vand.u32 2147483647, %v1832
        %v1842 = vand.u32 %v1841, 8388607
        %v1843 = vor.u32 %v1842, 8388608
        %v1844 = vsub.s32 0, %v1843
        %v1845 = vadd.s32 %v1840, 1
        %vm1846 = vcmp.gt.s32.totalorder %v1845, 0
        %v1847 = vsel %vm1846, %v1845, 0
        %v1848 = vshrl.u32 %v1847, 5
        %v1849 = vand.u32 %v1847, 31
        %v1850 = vsub.s32 32, %v1849
        %v1851 = vshrl.u32 683565275, %v1850
        %v1852 = vshll.u32 683565275, %v1849
        %v1853 = vshrl.u32 2475754826, %v1850
        %v1854 = vor.u32 %v1852, %v1853
        %v1855 = vshll.u32 2475754826, %v1849
        %v1856 = vshrl.u32 2131351028, %v1850
        %v1857 = vor.u32 %v1855, %v1856
        %v1858 = vshll.u32 2131351028, %v1849
        %v1859 = vshrl.u32 2102212464, %v1850
        %v1860 = vor.u32 %v1858, %v1859
        %v1861 = vshll.u32 2102212464, %v1849
        %v1862 = vshrl.u32 920167782, %v1850
        %v1863 = vor.u32 %v1861, %v1862
        %v1864 = vshll.u32 920167782, %v1849
        %v1865 = vshrl.u32 1326507024, %v1850
        %v1866 = vor.u32 %v1864, %v1865
        %vm1867 = vcmp.lt.s32.totalorder %v1848, 1
        %vm1868 = vcmp.lt.s32.totalorder %v1848, 2
        %vm1869 = vcmp.lt.s32.totalorder %v1848, 3
        %vm1870 = vcmp.lt.s32.totalorder %v1848, 4
        %v1871 = vsel %vm1867, %v1851, %v1854
        %v1872 = vsel %vm1870, %v1860, 2102212464
        %v1873 = vsel %vm1869, %v1857, %v1872
        %v1874 = vsel %vm1868, %v1871, %v1873
        %v1875 = vsel %vm1867, %v1854, %v1857
        %v1876 = vsel %vm1870, %v1863, 920167782
        %v1877 = vsel %vm1869, %v1860, %v1876
        %v1878 = vsel %vm1868, %v1875, %v1877
        %v1879 = vsel %vm1867, %v1857, %v1860
        %v1880 = vsel %vm1870, %v1866, 1326507024
        %v1881 = vsel %vm1869, %v1863, %v1880
        %v1882 = vsel %vm1868, %v1879, %v1881
        %v1883 = vshll.u32 %v1843, 8
        %v1884 = vmul.u32.u64.compose %v1883, %v1882
        %v1885 = vextract.low.u32 %v1884
        %v1886 = vextract.high.u32 %v1884
        %v1887 = vmul.u32.u64.compose %v1883, %v1878
        %v1888 = vextract.low.u32 %v1887
        %v1889 = vextract.high.u32 %v1887
        %v1890 = vmul.u32 %v1883, %v1874
        %v1891 = vadd.s32 %v1886, %v1888
        %vm1892 = vc.u32 %v1886, %v1888
        %v1893 = vadd.s32 %v1889, 1
        %v1894 = vsel %vm1892, %v1893, %v1889
        %v1895 = vadd.s32 %v1890, %v1894
        %v1896 = vadd.s32 %v1895, 536870912
        %v1897 = vshrl.u32 %v1896, 30
        %v1898 = vshll.u32 %v1897, 30
        %v1899 = vsub.s32 %v1895, %v1898
        %vm1900 = vcmp.lt.s32.totalorder %v1899, 0
        %v1901 = vsub.s32 0, %v1899
        %v1902 = vsel %vm1900, %v1901, %v1899
        %v1903 = vclz %v1902
        %v1904 = vsub.s32 %v1903, 2
        %vm1905 = vcmp.gt.s32.totalorder 0, %v1904
        %v1906 = vsel %vm1905, 0, %v1904
        %v1907 = vsub.s32 32, %v1906
        %v1908 = vshll.u32 %v1899, %v1906
        %v1909 = vshrl.u32 %v1891, %v1907
        %v1910 = vor.u32 %v1908, %v1909
        %v1911 = vsub.s32 4294967266, %v1906
        %v1912 = vadd.s32 %v1911, 127
        %v1913 = vshll.u32 %v1912, 23
        %v1914 = vor.u32 4788187, %v1913
        %v1915 = vand.u32 2147483647, %v1914
        %v1917 = vcvt.s32.f32 %v1910
        %v1918 = vmul.f32 %v1917, %v1915
        %v1919 = vxor.u32 %v1918, 2147483648
        %v1920 = vsel %vm1837, %v1919, %v1918
        %v1921 = vsub.s32 4, %v1897
        %v1922 = vsel %vm1837, %v1921, %v1897
        %v1923 = vsel %vm1836, %v1832, %v1920
        %v1924 = vsel %vm1836, 0, %v1922
        %v1925 = vcosq.f32.pop %v1923
        %v1926 = vsinq.f32.pop %v1923
        %vm1927 = vweird.f32 %v1832
        %v1928 = vadd.s32 %v1924, 3
        %v1929 = vand.u32 %v1928, 3
        %vm1930 = vcmp.lt.s32.totalorder %v1929, 2
        %vm1931 = vcmp.eq.s32.totalorder %v1929, 0
        %v1932 = vxor.u32 %v1926, 2147483648
        %v1933 = vsel %vm1931, %v1925, %v1932
        %vm1934 = vcmp.eq.s32.totalorder %v1929, 2
        %v1935 = vxor.u32 %v1925, 2147483648
        %v1936 = vsel %vm1934, %v1935, %v1926
        %v1937 = vsel %vm1930, %v1933, %v1936
        %v1938 = vsel %vm1927, nan, %v1937
        %v1939 = vld [vmem:[%s5] sm:$0xff]
        %v1940 = vld [vmem:[%s5 + $0x8] sm:$0xff]
        %v1941 = vld [vmem:[%s5 + $0x10] sm:$0xff]
        %v1942 = vld [vmem:[%s5 + $0x18] sm:$0xff]
        %v1943 = vld [vmem:[%s5 + $0x20] sm:$0xff]
        %v1944 = vld [vmem:[%s5 + $0x28] sm:$0xff]
        %v1945 = vld [vmem:[%s5 + $0x30] sm:$0xff]
        %v1946 = vld [vmem:[%s5 + $0x38] sm:$0xff]
        %v1947 = vld [vmem:[%s6] sm:$0xff]
        %v1948 = vld [vmem:[%s6 + $0x8] sm:$0xff]
        %v1949 = vld [vmem:[%s6 + $0x10] sm:$0xff]
        %v1950 = vld [vmem:[%s6 + $0x18] sm:$0xff]
        %v1951 = vld [vmem:[%s6 + $0x20] sm:$0xff]
        %v1952 = vld [vmem:[%s6 + $0x28] sm:$0xff]
        %v1953 = vld [vmem:[%s6 + $0x30] sm:$0xff]
        %v1954 = vld [vmem:[%s6 + $0x38] sm:$0xff]
        %1956 = vset.pattern.permute.xlu0 0
        %1957 = vperm.xlu0 %1956, %v1947
        %v1958 = vpop.permute.xlu0 %1957
        %1961 = vset.pattern.permute.xlu0 0
        %1962 = vperm.xlu0 %1961, %v1948
        %v1963 = vpop.permute.xlu0 %1962
        %1966 = vset.pattern.permute.xlu0 0
        %1967 = vperm.xlu0 %1966, %v1949
        %v1968 = vpop.permute.xlu0 %1967
        %1971 = vset.pattern.permute.xlu0 0
        %1972 = vperm.xlu0 %1971, %v1950
        %v1973 = vpop.permute.xlu0 %1972
        %1976 = vset.pattern.permute.xlu0 0
        %1977 = vperm.xlu0 %1976, %v1951
        %v1978 = vpop.permute.xlu0 %1977
        %1981 = vset.pattern.permute.xlu0 0
        %1982 = vperm.xlu0 %1981, %v1952
        %v1983 = vpop.permute.xlu0 %1982
        %1986 = vset.pattern.permute.xlu0 0
        %1987 = vperm.xlu0 %1986, %v1953
        %v1988 = vpop.permute.xlu0 %1987
        %1991 = vset.pattern.permute.xlu0 0
        %1992 = vperm.xlu0 %1991, %v1954
        %v1993 = vpop.permute.xlu0 %1992
        %vm1995 = vcmask 64512
        %v1997 = vsel %vm1995, %v1939, 0
        %v2000 = vsel %vm1995, %v1940, 0
        %v2003 = vsel %vm1995, %v1941, 0
        %v2006 = vsel %vm1995, %v1942, 0
        %v2009 = vsel %vm1995, %v1943, 0
        %v2012 = vsel %vm1995, %v1944, 0
        %v2015 = vsel %vm1995, %v1945, 0
        %v2018 = vsel %vm1995, %v1946, 0
        %2020 = vmatprep.subr.mxu0 0.0
        %2021 = vmatpush1.msra.mxu0 0.0
        %2022 = vmatprep.subr.mxu0 0.0
        %2023 = vmatpush1.msra.mxu0 0.0
        %2024 = vmatprep.subr.mxu0 0.0
        %2025 = vmatpush1.msra.mxu0 0.0
        %2026 = vmatprep.subr.mxu0 0.0
        %2027 = vmatpush1.msra.mxu0 0.0
        %2028 = vmatprep.subr.mxu0 0.0
        %2029 = vmatpush1.msra.mxu0 0.0
        %2030 = vmatprep.subr.mxu0 0.0
        %2031 = vmatpush1.msra.mxu0 0.0
        %2032 = vmatprep.subr.mxu0 0.0
        %2033 = vmatpush1.msra.mxu0 0.0
        %2034 = vmatprep.subr.mxu0 0.0
        %2035 = vmatpush1.msra.mxu0 0.0
        %2036 = vmatprep.subr.mxu0 0.0
        %2037 = vmatpush1.msra.mxu0 0.0
        %2038 = vmatprep.subr.mxu0 0.0
        %2039 = vmatpush1.msra.mxu0 0.0
        %2040 = vmatprep.subr.mxu0 0.0
        %2041 = vmatpush1.msra.mxu0 0.0
        %2042 = vmatprep.subr.mxu0 0.0
        %2043 = vmatpush1.msra.mxu0 0.0
        %2044 = vmatprep.subr.mxu0 0.0
        %2045 = vmatpush1.msra.mxu0 0.0
        %2046 = vmatprep.subr.mxu0 0.0
        %2047 = vmatpush1.msra.mxu0 0.0
        %2048 = vmatprep.subr.mxu0 0.0
        %2049 = vmatpush1.msra.mxu0 0.0
        %2050 = vmatprep.subr.mxu0 0.0
        %2051 = vmatpush1.msra.mxu0 %v1938
        %2052 = vmatprep.subr.mxu0 0.0
        %2053 = vmatpush2.msra.mxu0 0.0
        %2054 = vmatprep.subr.mxu0 0.0
        %2055 = vmatpush2.msra.mxu0 0.0
        %2056 = vmatprep.subr.mxu0 0.0
        %2057 = vmatpush2.msra.mxu0 0.0
        %2058 = vmatprep.subr.mxu0 0.0
        %2059 = vmatpush2.msra.mxu0 0.0
        %2060 = vmatprep.subr.mxu0 0.0
        %2061 = vmatpush2.msra.mxu0 0.0
        %2062 = vmatprep.subr.mxu0 0.0
        %2063 = vmatpush2.msra.mxu0 0.0
        %2064 = vmatprep.subr.mxu0 0.0
        %2065 = vmatpush2.msra.mxu0 0.0
        %2066 = vmatprep.subr.mxu0 0.0
        %2067 = vmatpush2.msra.mxu0 0.0
        %2068 = vmatprep.subr.mxu0 0.0
        %2069 = vmatpush2.msra.mxu0 0.0
        %2070 = vmatprep.subr.mxu0 0.0
        %2071 = vmatpush2.msra.mxu0 0.0
        %2072 = vmatprep.subr.mxu0 0.0
        %2073 = vmatpush2.msra.mxu0 0.0
        %2074 = vmatprep.subr.mxu0 0.0
        %2075 = vmatpush2.msra.mxu0 0.0
        %2076 = vmatprep.subr.mxu0 0.0
        %2077 = vmatpush2.msra.mxu0 0.0
        %2078 = vmatprep.subr.mxu0 0.0
        %2079 = vmatpush2.msra.mxu0 0.0
        %2080 = vmatprep.subr.mxu0 0.0
        %2081 = vmatpush2.msra.mxu0 0.0
        %2082 = vmatprep.subr.mxu0 0.0
        %2083 = vmatpush2.msra.mxu0 0.0
        %2084 = vmatprep.mubr.f32.mxu0 0.0
        %2085 = vmatmul.mubr.f32.gmra.mxu0 %v1997
        %v2086 = vpop.f32.mrf.mxu0
        %v2087 = vadd.f32 %v1958, %v2086
        %v2088 = vpop.f32.mrf.mxu0
        %2089 = vmatprep.mubr.f32.mxu0 0.0
        %2090 = vmatmul.mubr.f32.gmra.mxu0 %v2000
        %v2091 = vpop.f32.mrf.mxu0
        %v2092 = vadd.f32 %v1963, %v2091
        %v2093 = vpop.f32.mrf.mxu0
        %2094 = vmatprep.mubr.f32.mxu0 0.0
        %2095 = vmatmul.mubr.f32.gmra.mxu0 %v2003
        %v2096 = vpop.f32.mrf.mxu0
        %v2097 = vadd.f32 %v1968, %v2096
        %v2098 = vpop.f32.mrf.mxu0
        %2099 = vmatprep.mubr.f32.mxu0 0.0
        %2100 = vmatmul.mubr.f32.gmra.mxu0 %v2006
        %v2101 = vpop.f32.mrf.mxu0
        %v2102 = vadd.f32 %v1973, %v2101
        %v2103 = vpop.f32.mrf.mxu0
        %2104 = vmatprep.mubr.f32.mxu0 0.0
        %2105 = vmatmul.mubr.f32.gmra.mxu0 %v2009
        %v2106 = vpop.f32.mrf.mxu0
        %v2107 = vadd.f32 %v1978, %v2106
        %v2108 = vpop.f32.mrf.mxu0
        %2109 = vmatprep.mubr.f32.mxu0 0.0
        %2110 = vmatmul.mubr.f32.gmra.mxu0 %v2012
        %v2111 = vpop.f32.mrf.mxu0
        %v2112 = vadd.f32 %v1983, %v2111
        %v2113 = vpop.f32.mrf.mxu0
        %2114 = vmatprep.mubr.f32.mxu0 0.0
        %2115 = vmatmul.mubr.f32.gmra.mxu0 %v2015
        %v2116 = vpop.f32.mrf.mxu0
        %v2117 = vadd.f32 %v1988, %v2116
        %v2118 = vpop.f32.mrf.mxu0
        %2119 = vmatprep.mubr.f32.mxu0 0.0
        %2120 = vmatmul.mubr.f32.gmra.mxu0 %v2018
        %v2121 = vpop.f32.mrf.mxu0
        %v2122 = vadd.f32 %v1993, %v2121
        %v2123 = vpop.f32.mrf.mxu0
        %2124 = vdwg.mxu0
        %v2125 = vmul.f32 %v2087, 0.5
        %v2126 = vmul.f32 %v2092, 0.5
        %v2127 = vmul.f32 %v2097, 0.5
        %v2128 = vmul.f32 %v2102, 0.5
        %v2129 = vmul.f32 %v2107, 0.5
        %v2130 = vmul.f32 %v2112, 0.5
        %v2131 = vmul.f32 %v2117, 0.5
        %v2132 = vmul.f32 %v2122, 0.5
        %v2133 = vtanh.pop %v2125
        %v2134 = vtanh.pop %v2126
        %v2135 = vtanh.pop %v2127
        %v2136 = vtanh.pop %v2128
        %v2137 = vtanh.pop %v2129
        %v2138 = vtanh.pop %v2130
        %v2139 = vtanh.pop %v2131
        %v2140 = vtanh.pop %v2132
        %v2141 = vmul.f32 %v2133, 0.5
        %v2142 = vmul.f32 %v2134, 0.5
        %v2143 = vmul.f32 %v2135, 0.5
        %v2144 = vmul.f32 %v2136, 0.5
        %v2145 = vmul.f32 %v2137, 0.5
        %v2146 = vmul.f32 %v2138, 0.5
        %v2147 = vmul.f32 %v2139, 0.5
        %v2148 = vmul.f32 %v2140, 0.5
        %v2149 = vadd.f32 %v2141, 0.5
        %v2150 = vadd.f32 %v2142, 0.5
        %v2151 = vadd.f32 %v2143, 0.5
        %v2152 = vadd.f32 %v2144, 0.5
        %v2153 = vadd.f32 %v2145, 0.5
        %v2154 = vadd.f32 %v2146, 0.5
        %v2155 = vadd.f32 %v2147, 0.5
        %v2156 = vadd.f32 %v2148, 0.5
        %v2157 = vmul.f32 %v2087, %v2149
        %v2158 = vmul.f32 %v2092, %v2150
        %v2159 = vmul.f32 %v2097, %v2151
        %v2160 = vmul.f32 %v2102, %v2152
        %v2161 = vmul.f32 %v2107, %v2153
        %v2162 = vmul.f32 %v2112, %v2154
        %v2163 = vmul.f32 %v2117, %v2155
        %v2164 = vmul.f32 %v2122, %v2156
        %v2165 = vld [vmem:[%s7] sm:$0xff]
        %v2166 = vld [vmem:[%s8] sm:$0xff]
        %2168 = vset.pattern.permute.xlu0 0
        %2169 = vperm.xlu0 %2168, %v2166
        %v2170 = vpop.permute.xlu0 %2169
        %v2173 = vsel %vm1761, %v2165, 0
        %2175 = vmatprep.subr.mxu0 0.0
        %2176 = vmatpush1.msra.mxu0 0.0
        %2177 = vmatprep.subr.mxu0 0.0
        %2178 = vmatpush1.msra.mxu0 0.0
        %2179 = vmatprep.subr.mxu0 0.0
        %2180 = vmatpush1.msra.mxu0 0.0
        %2181 = vmatprep.subr.mxu0 0.0
        %2182 = vmatpush1.msra.mxu0 0.0
        %2183 = vmatprep.subr.mxu0 0.0
        %2184 = vmatpush1.msra.mxu0 0.0
        %2185 = vmatprep.subr.mxu0 0.0
        %2186 = vmatpush1.msra.mxu0 0.0
        %2187 = vmatprep.subr.mxu0 0.0
        %2188 = vmatpush1.msra.mxu0 0.0
        %2189 = vmatprep.subr.mxu0 0.0
        %2190 = vmatpush1.msra.mxu0 0.0
        %2191 = vmatprep.subr.mxu0 0.0
        %2192 = vmatpush1.msra.mxu0 %v2164
        %2193 = vmatprep.subr.mxu0 0.0
        %2194 = vmatpush1.msra.mxu0 %v2163
        %2195 = vmatprep.subr.mxu0 0.0
        %2196 = vmatpush1.msra.mxu0 %v2162
        %2197 = vmatprep.subr.mxu0 0.0
        %2198 = vmatpush1.msra.mxu0 %v2161
        %2199 = vmatprep.subr.mxu0 0.0
        %2200 = vmatpush1.msra.mxu0 %v2160
        %2201 = vmatprep.subr.mxu0 0.0
        %2202 = vmatpush1.msra.mxu0 %v2159
        %2203 = vmatprep.subr.mxu0 0.0
        %2204 = vmatpush1.msra.mxu0 %v2158
        %2205 = vmatprep.subr.mxu0 0.0
        %2206 = vmatpush1.msra.mxu0 %v2157
        %2207 = vmatprep.subr.mxu0 0.0
        %2208 = vmatpush2.msra.mxu0 0.0
        %2209 = vmatprep.subr.mxu0 0.0
        %2210 = vmatpush2.msra.mxu0 0.0
        %2211 = vmatprep.subr.mxu0 0.0
        %2212 = vmatpush2.msra.mxu0 0.0
        %2213 = vmatprep.subr.mxu0 0.0
        %2214 = vmatpush2.msra.mxu0 0.0
        %2215 = vmatprep.subr.mxu0 0.0
        %2216 = vmatpush2.msra.mxu0 0.0
        %2217 = vmatprep.subr.mxu0 0.0
        %2218 = vmatpush2.msra.mxu0 0.0
        %2219 = vmatprep.subr.mxu0 0.0
        %2220 = vmatpush2.msra.mxu0 0.0
        %2221 = vmatprep.subr.mxu0 0.0
        %2222 = vmatpush2.msra.mxu0 0.0
        %2223 = vmatprep.subr.mxu0 0.0
        %2224 = vmatpush2.msra.mxu0 0.0
        %2225 = vmatprep.subr.mxu0 0.0
        %2226 = vmatpush2.msra.mxu0 0.0
        %2227 = vmatprep.subr.mxu0 0.0
        %2228 = vmatpush2.msra.mxu0 0.0
        %2229 = vmatprep.subr.mxu0 0.0
        %2230 = vmatpush2.msra.mxu0 0.0
        %2231 = vmatprep.subr.mxu0 0.0
        %2232 = vmatpush2.msra.mxu0 0.0
        %2233 = vmatprep.subr.mxu0 0.0
        %2234 = vmatpush2.msra.mxu0 0.0
        %2235 = vmatprep.subr.mxu0 0.0
        %2236 = vmatpush2.msra.mxu0 0.0
        %2237 = vmatprep.subr.mxu0 0.0
        %2238 = vmatpush2.msra.mxu0 0.0
        %2239 = vmatprep.mubr.f32.mxu0 0.0
        %2240 = vmatmul.mubr.f32.gmra.mxu0 %v2173
        %v2241 = vpop.f32.mrf.mxu0
        %v2242 = vadd.f32 %v2170, %v2241
        %v2243 = vpop.f32.mrf.mxu0
        %2244 = vdwg.mxu0
        %2245 = vst [vmem:[%s319] sm:$0xff] %v1938
        %2246 = vst [vmem:[%s319 + $0x8] sm:$0xff] %v2242
        %s2247 = sand.u32 %s222, 1
        %s2248 = sand.u32 %s222, 1
        %s2249 = smul.addr %s2248, 16
        %s2250 = scalar_lea.vmem [#allocation2], %s2249
        // Predicated region
        $region57: #{siren_forward.1} parent=55 // pred_check
          %p2251 = pneg %p232
        $region58: #{siren_forward.1} parent=55 // pred_check_branch
          %2253 = sbr.rel (%p2251) target = $region60
        $region59: #{siren_forward.1} parent=55 // pred_region
          %s2254 = smul.addr %s20, 8
          %s2255 = scalar_lea.vmem %s9, %s2254
          // Predicated region
          $region61: #{siren_forward.1} parent=59 // pred_check
            _
          $region62: #{siren_forward.1} parent=59 // pred_check_branch
            %2257 = sbr.rel (0) target = $region64
          $region63: #{siren_forward.1} parent=59 // pred_region
            // Predicated region
            $region65: #{siren_forward.1} parent=63 // pred_check
              _
            $region66: #{siren_forward.1} parent=63 // pred_check_branch
              %2259 = sbr.rel (0) target = $region68
            $region67: #{siren_forward.1} parent=63 // pred_region
              // Predicated region
              $region80: #{siren_forward.1} parent=67 // pred_check
                _
              $region81: #{siren_forward.1} parent=67 // pred_check_branch
                %2277 = sbr.rel (0) target = $region83
              $region82: #{siren_forward.1} parent=67 // pred_region
                loop: start=0, step=1, limit=1
                $region84: #{siren_forward.1} parent=82 // loop_pre_header
                  _
                $region85: #{siren_forward.1} parent=82 // loop_header
                  %s2279 = sphi 0, %s2283
                  %p2280 = scmp.ge.s32.totalorder %s2279, 1
                  %s2284 = sphi %s2250, %s2250
                  %s2285 = sphi %s2255, %s2255
                $region86: #{siren_forward.1} parent=82 // loop_header_branch
                  %2282 = sbr.rel (%p2280) target = $region90
                $region87: #{siren_forward.1} parent=82 // loop_body
                  %v2286 = vld [vmem:[%s2284] sm:$0xff]
                  %2287 = vst [vmem:[%s2285] sm:$0xff] %v2286
                  %v2288 = vld [vmem:[%s2284 + $0x8] sm:$0xff]
                  %2289 = vst [vmem:[%s2285 + $0x10] sm:$0xff] %v2288
                $region88: #{siren_forward.1} parent=82 // loop_footer
                  %s2283 = sadd.s32 1, %s2279
                $region89: #{siren_forward.1} parent=82 // loop_footer_branch
                  %2278 = sbr.rel target = $region85
                $region90: #{siren_forward.1} parent=82 // loop_exit
                  _
              $region83: #{siren_forward.1} parent=67 // pred_fallthru
                _
              // Predicated region
              $region91: #{siren_forward.1} parent=67 // pred_check
                _
              $region92: #{siren_forward.1} parent=67 // pred_check_branch
                %2291 = sbr.rel target = $region94
              $region93: #{siren_forward.1} parent=67 // pred_region
                _
              $region94: #{siren_forward.1} parent=67 // pred_fallthru
                _
            $region68: #{siren_forward.1} parent=63 // pred_fallthru
              _
            // Predicated region
            $region69: #{siren_forward.1} parent=63 // pred_check
              _
            $region70: #{siren_forward.1} parent=63 // pred_check_branch
              %2261 = sbr.rel target = $region72
            $region71: #{siren_forward.1} parent=63 // pred_region
              %s2263 = ssub.s32 256, 1
              loop: start=0, step=1, limit=1
              $region73: #{siren_forward.1} parent=71 // loop_pre_header
                _
              $region74: #{siren_forward.1} parent=71 // loop_header
                %s2265 = sphi 0, %s2269
                %p2266 = scmp.ge.s32.totalorder %s2265, 1
                %s2270 = sphi %s2250, %s2250
                %s2271 = sphi %s2255, %s2255
              $region75: #{siren_forward.1} parent=71 // loop_header_branch
                %2268 = sbr.rel (%p2266) target = $region79
              $region76: #{siren_forward.1} parent=71 // loop_body
                %v2272 = vld [vmem:[%s2270] sm:%s2263]
                %2273 = vst [vmem:[%s2271] sm:%s2263] %v2272
                %v2274 = vld [vmem:[%s2270 + $0x8] sm:%s2263]
                %2275 = vst [vmem:[%s2271 + $0x10] sm:%s2263] %v2274
              $region77: #{siren_forward.1} parent=71 // loop_footer
                %s2269 = sadd.s32 1, %s2265
              $region78: #{siren_forward.1} parent=71 // loop_footer_branch
                %2264 = sbr.rel target = $region74
              $region79: #{siren_forward.1} parent=71 // loop_exit
                _
            $region72: #{siren_forward.1} parent=63 // pred_fallthru
              _
          $region64: #{siren_forward.1} parent=59 // pred_fallthru
            _
          %2292 = vnop
        $region60: #{siren_forward.1} parent=55 // pred_fallthru
          _
      $region56: #{siren_forward.1} parent=5 // pred_fallthru
        _
      %p2293 = scmp.le.s32.totalorder 2, %s15
      // Predicated region
      $region95: #{siren_forward.1} parent=5 // pred_check
        %p2294 = pneg %p2293
      $region96: #{siren_forward.1} parent=5 // pred_check_branch
        %2296 = sbr.rel (%p2294) target = $region98
      $region97: #{siren_forward.1} parent=5 // pred_region
        %s2297 = ssub.s32 %s15, 2
        // Predicated region
        $region99: #{siren_forward.1} parent=97 // pred_check
          %p2298 = pneg %p238
        $region100: #{siren_forward.1} parent=97 // pred_check_branch
          %2300 = sbr.rel (%p2298) target = $region102
        $region101: #{siren_forward.1} parent=97 // pred_region
          %s2301 = sand.u32 %s223, 1
          %s2302 = sand.u32 %s223, 1
          %s2303 = smul.addr %s2302, 16
          %s2304 = scalar_lea.vmem [#allocation2], %s2303
        $region102: #{siren_forward.1} parent=97 // pred_fallthru
          _
      $region98: #{siren_forward.1} parent=5 // pred_fallthru
        _
    $region6: #{siren_forward.1} parent=1 // loop_footer
      %s19 = sadd.s32 1, %s15
    $region7: #{siren_forward.1} parent=1 // loop_footer_branch
      %14 = sbr.rel target = $region3
    $region8: #{siren_forward.1} parent=1 // loop_exit
      _

</llo_original>
